<compile_context>
chip_gen: v5e
topology: v5e:2x2
jax: 0.10.0
libtpu: 0.0.40
codegen_flags: <defaults>
</compile_context>

<pallas_src>
import functools

import jax
import jax.numpy as jnp
from jax.experimental import pallas as pl
from jax.experimental.pallas import tpu as pltpu

LN_EPS = 1e-5


def _layernorm(h, gamma, beta):
    mean = jnp.mean(h, axis=-1, keepdims=True)
    var = jnp.mean((h - mean) ** 2, axis=-1, keepdims=True)
    inv = jax.lax.rsqrt(var + LN_EPS)
    return (h - mean) * inv * gamma + beta


def variation_kernel(x_ref, eps_ref,
                     w1_ref, w2_ref, wmuls_ref, wzz_ref, wzx_ref, vec_ref,
                     slab_ref):
    E = x_ref.shape[-1]
    Z = eps_ref.shape[-1]
    O = wzz_ref.shape[-1]
    W = slab_ref.shape[-1]

    # Packed small vectors: rows are [b1, g1, be1, b2, g2, be2, bmu|bls, bz].
    vecs = vec_ref[...]
    b1, g1, be1 = vecs[0:1, :Z], vecs[1:2, :Z], vecs[2:3, :Z]
    b2, g2, be2 = vecs[3:4, :Z], vecs[4:5, :Z], vecs[5:6, :Z]
    bmuls = vecs[6:7, :2 * Z]
    bz = vecs[7:8, :O]

    x = x_ref[...].astype(jnp.float32)

    # x-only half of z_to_w, hoisted ahead of the mu/std chain:
    #   tanh(cat([z, x])) @ [Wz; Wx] == tanh(z) @ Wz + tanh(x) @ Wx
    # so no lane-boundary concatenate is needed and this MXU push overlaps the
    # fc-chain latency.
    out_x = jnp.dot(jnp.tanh(x), wzx_ref[...], preferred_element_type=jnp.float32)

    # fc: Linear -> LayerNorm -> Tanh -> Linear -> LayerNorm -> Tanh
    h = jnp.dot(x, w1_ref[...], preferred_element_type=jnp.float32) + b1
    h = jnp.tanh(_layernorm(h, g1, be1))
    h = jnp.dot(h, w2_ref[...], preferred_element_type=jnp.float32) + b2
    h = jnp.tanh(_layernorm(h, g2, be2))

    # Fused mu | logsigma matmul (lane-dense N = 2Z), split afterwards.
    muls = jnp.dot(h, wmuls_ref[...], preferred_element_type=jnp.float32) + bmuls
    mu = muls[:, :Z]
    std = jnp.exp(0.5 * muls[:, Z:])

    z = eps_ref[...].astype(jnp.float32) * std + mu
    out = (jnp.dot(jnp.tanh(z), wzz_ref[...], preferred_element_type=jnp.float32)
           + out_x + bz)

    # Single lane-dense output slab: [out | mu | std | zero-pad to 128 mult].
    parts = [out, mu, std]
    pad = W - (O + 2 * Z)
    if pad:
        parts.append(jnp.zeros((out.shape[0], pad), jnp.float32))
    slab_ref[...] = jnp.concatenate(parts, axis=-1).astype(slab_ref.dtype)


def _min_grid_steps():
    """>=2 parallel grid steps only pays off on chips with 2 TensorCores per
    device (v4/v5p megacore, v7x); on single-TC chips bigger tiles win."""
    try:
        kind = jax.devices()[0].device_kind.lower()
    except Exception:
        return 1
    if any(t in kind for t in ("v5e", "v6e", "lite")):
        return 1
    if any(t in kind for t in ("v4", "v5p", "v7", "7x")):
        return 2
    return 1


def _choose_tile(M, cap=512, min_steps=1):
    """Pick a row tile: as big as the cap allows, never padding M.  Prefer a
    multiple-of-8 divisor of M (even step count on 2-TC chips); otherwise fall
    back to a ragged last tile, which Pallas masks automatically."""
    cap = max(8, (cap // 8) * 8)
    if M <= 8:
        return M  # full-dim block
    top = min(cap, (M // 8) * 8)
    for require_even in (min_steps > 1, False):
        t = top
        while t >= 8:
            if M % t == 0:
                steps = M // t
                if steps >= min_steps and (not require_even or steps % 2 == 0):
                    return t
            t -= 8
    # No suitable divisor: ragged last tile (OOB rows masked by Pallas).
    return min(cap, ((M + 7) // 8) * 8)


@functools.partial(jax.jit, static_argnames=("tm", "buffered_consts"))
def _variation_pallas(x2, eps2, w1, w2, wmuls, wzz, wzx, vec, *,
                      tm, buffered_consts):
    M, E = x2.shape
    Z = eps2.shape[-1]
    O = wzz.shape[-1]
    P = vec.shape[-1]
    W = O + 2 * Z
    Wpad = ((W + 127) // 128) * 128

    row = lambda i: (i, 0)
    full = lambda i: (0, 0)

    def const_spec(shape):
        # Constant-index blocks never change across the grid; single-buffer
        # them to halve their VMEM footprint (important on v7x: 64 MiB VMEM).
        if buffered_consts and hasattr(pl, "Buffered"):
            return pl.BlockSpec(shape, full, pipeline_mode=pl.Buffered(1))
        return pl.BlockSpec(shape, full)

    in_specs = [
        pl.BlockSpec((tm, E), row),       # x rows
        pl.BlockSpec((tm, Z), row),       # eps rows
        const_spec((E, Z)),               # w1
        const_spec((Z, Z)),               # w2
        const_spec((Z, 2 * Z)),           # wmu | wls fused
        const_spec((Z, O)),               # z_to_w, z part
        const_spec((E, O)),               # z_to_w, lora_x part
        const_spec((8, P)),               # packed biases / gamma / beta
    ]
    out_specs = pl.BlockSpec((tm, Wpad), row)
    out_shape = jax.ShapeDtypeStruct((M, Wpad), x2.dtype)

    # Scoped-VMEM budget: double-buffered row blocks + weight blocks + slack.
    itemsize = 4
    row_bytes = tm * (E + Z + Wpad) * itemsize
    wgt_bytes = (E * Z + Z * Z + Z * 2 * Z + Z * O + E * O + 8 * P) * itemsize
    wgt_bufs = 1 if buffered_consts else 2
    needed = 2 * row_bytes + wgt_bufs * wgt_bytes + (4 << 20)
    vmem_limit = int(min(64 << 20, max(32 << 20, needed)))

    return pl.pallas_call(
        variation_kernel,
        out_shape=out_shape,
        grid_spec=pltpu.PrefetchScalarGridSpec(
            num_scalar_prefetch=0,
            grid=(pl.cdiv(M, tm),),
            in_specs=in_specs,
            out_specs=out_specs,
        ),
        compiler_params=pltpu.CompilerParams(
            dimension_semantics=("parallel",),
            vmem_limit_bytes=vmem_limit,
        ),
    )(x2, eps2, w1, w2, wmuls, wzz, wzx, vec)


def variation_forward(x, eps, packed, tm=512):
    """x: (B, S, input_size); eps: (B, S, z_size); packed: pack_params()."""
    B, S, E = x.shape
    Z = eps.shape[-1]
    O = packed["wzz"].shape[-1]
    M = B * S

    tm_eff = _choose_tile(M, cap=tm, min_steps=_min_grid_steps())

    x2 = x.reshape(M, E)
    eps2 = eps.reshape(M, Z)
    args = (x2, eps2, packed["w1"], packed["w2"], packed["wmuls"],
            packed["wzz"], packed["wzx"], packed["vec"])
    try:
        slab = _variation_pallas(*args, tm=tm_eff, buffered_consts=True)
    except Exception:
        # pl.Buffered(1) not supported by this JAX/Mosaic version: retry with
        # default double buffering (previous known-good configuration).
        slab = _variation_pallas(*args, tm=tm_eff, buffered_consts=False)

    out = slab[:, :O].reshape(B, S, O)
    mu = slab[:, O:O + Z].reshape(B, S, Z)
    std = slab[:, O + Z:O + 2 * Z].reshape(B, S, Z)
    return out, mu, std


def init_params(key, input_size, output_size, z_size):
    """Deterministic init. Linear weights ~ U(-0.02, 0.02); biases / LN params
    get small random values so the packed-vector path is exercised.
    Weights are stored pre-transposed as (in, out)."""
    ks = jax.random.split(key, 16)
    u = lambda k, shape, lo=-0.02, hi=0.02: jax.random.uniform(
        k, shape, jnp.float32, lo, hi)
    E, Z, O = input_size, z_size, output_size
    return {
        "w1": u(ks[0], (E, Z)), "b1": u(ks[6], (1, Z)),
        "g1": 1.0 + u(ks[7], (1, Z)), "be1": u(ks[8], (1, Z)),
        "w2": u(ks[1], (Z, Z)), "b2": u(ks[9], (1, Z)),
        "g2": 1.0 + u(ks[10], (1, Z)), "be2": u(ks[11], (1, Z)),
        "wmu": u(ks[2], (Z, Z)), "bmu": u(ks[12], (1, Z)),
        "wls": u(ks[3], (Z, Z)), "bls": u(ks[13], (1, Z)),
        # z_to_w weight split: z-part (Z, O) and lora_x-part (E, O)
        "wzz": u(ks[4], (Z, O)), "wzx": u(ks[5], (E, O)),
        "bz": u(ks[14], (1, O)),
    }


def pack_params(p, weight_dtype=jnp.float32):
    """One-time packing for the kernel: fuse wmu|wls, keep wzz/wzx separate
    (the kernel accumulates two matmuls instead of concatenating [z, x]), and
    pack the nine small vectors into a single (8, max(2Z, O)) block.
    weight_dtype=jnp.bfloat16 halves weight DMA/VMEM (MXU still accumulates in
    f32), but at these tiny widths the rounding exceeds the 1e-4 check, so the
    demo keeps f32."""
    E, Z = p["w1"].shape
    O = p["wzz"].shape[1]
    P = max(2 * Z, O)
    vec = jnp.zeros((8, P), jnp.float32)
    vec = vec.at[0, :Z].set(p["b1"][0])
    vec = vec.at[1, :Z].set(p["g1"][0])
    vec = vec.at[2, :Z].set(p["be1"][0])
    vec = vec.at[3, :Z].set(p["b2"][0])
    vec = vec.at[4, :Z].set(p["be2"][0] * 0 + p["b2"][0] * 0 + p["g2"][0])
    vec = vec.at[5, :Z].set(p["be2"][0])
    vec = vec.at[6, :2 * Z].set(jnp.concatenate([p["bmu"][0], p["bls"][0]]))
    vec = vec.at[7, :O].set(p["bz"][0])
    cast = lambda w: w.astype(weight_dtype)
    return {
        "w1": cast(p["w1"]),
        "w2": cast(p["w2"]),
        "wmuls": cast(jnp.concatenate([p["wmu"], p["wls"]], axis=1)),  # (Z, 2Z)
        "wzz": cast(p["wzz"]),                                         # (Z, O)
        "wzx": cast(p["wzx"]),                                         # (E, O)
        "vec": vec,
    }


def reference_forward(x, eps, p):
    """Pure-JAX reference matching the PyTorch semantics."""
    h = jnp.tanh(_layernorm(x @ p["w1"] + p["b1"], p["g1"], p["be1"]))
    h = jnp.tanh(_layernorm(h @ p["w2"] + p["b2"], p["g2"], p["be2"]))
    mu = h @ p["wmu"] + p["bmu"]
    std = jnp.exp(0.5 * (h @ p["wls"] + p["bls"]))
    z = eps * std + mu
    zc = jnp.concatenate([z, x], axis=-1)
    wz = jnp.concatenate([p["wzz"], p["wzx"]], axis=0)
    out = jnp.tanh(zc) @ wz + p["bz"]
    return out, mu, std


if __name__ == "__main__":
    B, S = 2, 8
    input_size = 32      # == output_size (required by the reference module)
    output_size = 32
    z_size = 64

    key = jax.random.PRNGKey(0)
    kx, keps, kp = jax.random.split(key, 3)

    x = jax.random.normal(kx, (B, S, input_size), jnp.float32)
    eps = jax.random.normal(keps, (B, S, z_size), jnp.float32)
    params = init_params(kp, input_size, output_size, z_size)
    packed = pack_params(params)

    out, mu, std = variation_forward(x, eps, packed)
    jax.block_until_ready((out, mu, std))

    # sanity check against pure-JAX reference
    r_out, r_mu, r_std = reference_forward(x, eps, params)
    assert jnp.allclose(out, r_out, atol=1e-4, rtol=1e-4)
    assert jnp.allclose(mu, r_mu, atol=1e-4, rtol=1e-4)
    assert jnp.allclose(std, r_std, atol=1e-4, rtol=1e-4)

    print("KERNEL_OK")
</pallas_src>

<mosaic_0001>
module attributes {stable_mosaic.version = 11 : i64} {
  func.func @variation_kernel(%arg0: i32, %arg1: memref<16x32xf32, #tpu.memory_space<vmem>>, %arg2: memref<16x64xf32, #tpu.memory_space<vmem>>, %arg3: memref<32x64xf32, #tpu.memory_space<vmem>>, %arg4: memref<64x64xf32, #tpu.memory_space<vmem>>, %arg5: memref<64x128xf32, #tpu.memory_space<vmem>>, %arg6: memref<64x32xf32, #tpu.memory_space<vmem>>, %arg7: memref<32x32xf32, #tpu.memory_space<vmem>>, %arg8: memref<8x128xf32, #tpu.memory_space<vmem>>, %arg9: memref<16x256xf32, #tpu.memory_space<vmem>>) attributes {dimension_semantics = [#tpu.dimension_semantics<parallel>], iteration_bounds = array<i64: 1>, scalar_prefetch = 0 : i64, scratch_operands = 0 : i64, tpu.core_type = #tpu.core_type<tc>, window_params = [{transform_indices = @transform_0, window_bounds = array<i64: 16, 32>}, {transform_indices = @transform_1, window_bounds = array<i64: 16, 64>}, {pipeline_mode = #tpu.pipeline_mode<synchronous>, transform_indices = @transform_2, window_bounds = array<i64: 32, 64>}, {pipeline_mode = #tpu.pipeline_mode<synchronous>, transform_indices = @transform_3, window_bounds = array<i64: 64, 64>}, {pipeline_mode = #tpu.pipeline_mode<synchronous>, transform_indices = @transform_4, window_bounds = array<i64: 64, 128>}, {pipeline_mode = #tpu.pipeline_mode<synchronous>, transform_indices = @transform_5, window_bounds = array<i64: 64, 32>}, {pipeline_mode = #tpu.pipeline_mode<synchronous>, transform_indices = @transform_6, window_bounds = array<i64: 32, 32>}, {pipeline_mode = #tpu.pipeline_mode<synchronous>, transform_indices = @transform_7, window_bounds = array<i64: 8, 128>}, {transform_indices = @transform_8, window_bounds = array<i64: 16, 256>}]} {
    %c0 = arith.constant 0 : index
    %c0_0 = arith.constant 0 : index
    %0 = vector.load %arg8[%c0, %c0_0] : memref<8x128xf32, #tpu.memory_space<vmem>>, vector<8x128xf32>
    %1 = vector.extract_strided_slice %0 {offsets = [0, 0], sizes = [1, 64], strides = [1, 1]} : vector<8x128xf32> to vector<1x64xf32>
    %2 = vector.extract_strided_slice %0 {offsets = [1, 0], sizes = [1, 64], strides = [1, 1]} : vector<8x128xf32> to vector<1x64xf32>
    %3 = vector.extract_strided_slice %0 {offsets = [2, 0], sizes = [1, 64], strides = [1, 1]} : vector<8x128xf32> to vector<1x64xf32>
    %4 = vector.extract_strided_slice %0 {offsets = [3, 0], sizes = [1, 64], strides = [1, 1]} : vector<8x128xf32> to vector<1x64xf32>
    %5 = vector.extract_strided_slice %0 {offsets = [4, 0], sizes = [1, 64], strides = [1, 1]} : vector<8x128xf32> to vector<1x64xf32>
    %6 = vector.extract_strided_slice %0 {offsets = [5, 0], sizes = [1, 64], strides = [1, 1]} : vector<8x128xf32> to vector<1x64xf32>
    %7 = vector.extract_strided_slice %0 {offsets = [6, 0], sizes = [1, 128], strides = [1, 1]} : vector<8x128xf32> to vector<1x128xf32>
    %8 = vector.extract_strided_slice %0 {offsets = [7, 0], sizes = [1, 32], strides = [1, 1]} : vector<8x128xf32> to vector<1x32xf32>
    %c0_1 = arith.constant 0 : index
    %c0_2 = arith.constant 0 : index
    %9 = vector.load %arg1[%c0_1, %c0_2] : memref<16x32xf32, #tpu.memory_space<vmem>>, vector<16x32xf32>
    %10 = math.tanh %9 : vector<16x32xf32>
    %c0_3 = arith.constant 0 : index
    %c0_4 = arith.constant 0 : index
    %11 = vector.load %arg7[%c0_3, %c0_4] : memref<32x32xf32, #tpu.memory_space<vmem>>, vector<32x32xf32>
    %cst = arith.constant dense<0.000000e+00> : vector<16x32xf32>
    %12 = tpu.matmul %10, %11, %cst {dimension_numbers = #tpu.dot_dimension_numbers<[1], [0], [0], [1], [0, 0, 1, 1], [], []>} : vector<16x32xf32>, vector<32x32xf32>, vector<16x32xf32> -> vector<16x32xf32>
    %c0_5 = arith.constant 0 : index
    %c0_6 = arith.constant 0 : index
    %13 = vector.load %arg3[%c0_5, %c0_6] : memref<32x64xf32, #tpu.memory_space<vmem>>, vector<32x64xf32>
    %cst_7 = arith.constant dense<0.000000e+00> : vector<16x64xf32>
    %14 = tpu.matmul %9, %13, %cst_7 {dimension_numbers = #tpu.dot_dimension_numbers<[1], [0], [0], [1], [0, 0, 1, 1], [], []>} : vector<16x32xf32>, vector<32x64xf32>, vector<16x64xf32> -> vector<16x64xf32>
    %15 = vector.broadcast %1 : vector<1x64xf32> to vector<16x64xf32>
    %16 = arith.addf %14, %15 : vector<16x64xf32>
    %cst_8 = arith.constant dense<0.000000e+00> : vector<16xf32>
    %17 = vector.multi_reduction <add>, %16, %cst_8 [1] : vector<16x64xf32> to vector<16xf32>
    %18 = vector.shape_cast %17 : vector<16xf32> to vector<16x1xf32>
    %cst_9 = arith.constant 6.400000e+01 : f32
    %19 = vector.broadcast %cst_9 : f32 to vector<16x1xf32>
    %20 = arith.divf %18, %19 : vector<16x1xf32>
    %21 = vector.broadcast %20 : vector<16x1xf32> to vector<16x64xf32>
    %22 = arith.subf %16, %21 : vector<16x64xf32>
    %23 = arith.mulf %22, %22 : vector<16x64xf32>
    %cst_10 = arith.constant dense<0.000000e+00> : vector<16xf32>
    %24 = vector.multi_reduction <add>, %23, %cst_10 [1] : vector<16x64xf32> to vector<16xf32>
    %25 = vector.shape_cast %24 : vector<16xf32> to vector<16x1xf32>
    %cst_11 = arith.constant 6.400000e+01 : f32
    %26 = vector.broadcast %cst_11 : f32 to vector<16x1xf32>
    %27 = arith.divf %25, %26 : vector<16x1xf32>
    %cst_12 = arith.constant 9.99999974E-6 : f32
    %28 = vector.broadcast %cst_12 : f32 to vector<16x1xf32>
    %29 = arith.addf %27, %28 : vector<16x1xf32>
    %30 = math.rsqrt %29 : vector<16x1xf32>
    %31 = vector.broadcast %20 : vector<16x1xf32> to vector<16x64xf32>
    %32 = arith.subf %16, %31 : vector<16x64xf32>
    %33 = vector.broadcast %30 : vector<16x1xf32> to vector<16x64xf32>
    %34 = arith.mulf %32, %33 : vector<16x64xf32>
    %35 = vector.broadcast %2 : vector<1x64xf32> to vector<16x64xf32>
    %36 = arith.mulf %34, %35 : vector<16x64xf32>
    %37 = vector.broadcast %3 : vector<1x64xf32> to vector<16x64xf32>
    %38 = arith.addf %36, %37 : vector<16x64xf32>
    %39 = math.tanh %38 : vector<16x64xf32>
    %c0_13 = arith.constant 0 : index
    %c0_14 = arith.constant 0 : index
    %40 = vector.load %arg4[%c0_13, %c0_14] : memref<64x64xf32, #tpu.memory_space<vmem>>, vector<64x64xf32>
    %cst_15 = arith.constant dense<0.000000e+00> : vector<16x64xf32>
    %41 = tpu.matmul %39, %40, %cst_15 {dimension_numbers = #tpu.dot_dimension_numbers<[1], [0], [0], [1], [0, 0, 1, 1], [], []>} : vector<16x64xf32>, vector<64x64xf32>, vector<16x64xf32> -> vector<16x64xf32>
    %42 = vector.broadcast %4 : vector<1x64xf32> to vector<16x64xf32>
    %43 = arith.addf %41, %42 : vector<16x64xf32>
    %cst_16 = arith.constant dense<0.000000e+00> : vector<16xf32>
    %44 = vector.multi_reduction <add>, %43, %cst_16 [1] : vector<16x64xf32> to vector<16xf32>
    %45 = vector.shape_cast %44 : vector<16xf32> to vector<16x1xf32>
    %cst_17 = arith.constant 6.400000e+01 : f32
    %46 = vector.broadcast %cst_17 : f32 to vector<16x1xf32>
    %47 = arith.divf %45, %46 : vector<16x1xf32>
    %48 = vector.broadcast %47 : vector<16x1xf32> to vector<16x64xf32>
    %49 = arith.subf %43, %48 : vector<16x64xf32>
    %50 = arith.mulf %49, %49 : vector<16x64xf32>
    %cst_18 = arith.constant dense<0.000000e+00> : vector<16xf32>
    %51 = vector.multi_reduction <add>, %50, %cst_18 [1] : vector<16x64xf32> to vector<16xf32>
    %52 = vector.shape_cast %51 : vector<16xf32> to vector<16x1xf32>
    %cst_19 = arith.constant 6.400000e+01 : f32
    %53 = vector.broadcast %cst_19 : f32 to vector<16x1xf32>
    %54 = arith.divf %52, %53 : vector<16x1xf32>
    %cst_20 = arith.constant 9.99999974E-6 : f32
    %55 = vector.broadcast %cst_20 : f32 to vector<16x1xf32>
    %56 = arith.addf %54, %55 : vector<16x1xf32>
    %57 = math.rsqrt %56 : vector<16x1xf32>
    %58 = vector.broadcast %47 : vector<16x1xf32> to vector<16x64xf32>
    %59 = arith.subf %43, %58 : vector<16x64xf32>
    %60 = vector.broadcast %57 : vector<16x1xf32> to vector<16x64xf32>
    %61 = arith.mulf %59, %60 : vector<16x64xf32>
    %62 = vector.broadcast %5 : vector<1x64xf32> to vector<16x64xf32>
    %63 = arith.mulf %61, %62 : vector<16x64xf32>
    %64 = vector.broadcast %6 : vector<1x64xf32> to vector<16x64xf32>
    %65 = arith.addf %63, %64 : vector<16x64xf32>
    %66 = math.tanh %65 : vector<16x64xf32>
    %c0_21 = arith.constant 0 : index
    %c0_22 = arith.constant 0 : index
    %67 = vector.load %arg5[%c0_21, %c0_22] : memref<64x128xf32, #tpu.memory_space<vmem>>, vector<64x128xf32>
    %cst_23 = arith.constant dense<0.000000e+00> : vector<16x128xf32>
    %68 = tpu.matmul %66, %67, %cst_23 {dimension_numbers = #tpu.dot_dimension_numbers<[1], [0], [0], [1], [0, 0, 1, 1], [], []>} : vector<16x64xf32>, vector<64x128xf32>, vector<16x128xf32> -> vector<16x128xf32>
    %69 = vector.broadcast %7 : vector<1x128xf32> to vector<16x128xf32>
    %70 = arith.addf %68, %69 : vector<16x128xf32>
    %71 = vector.extract_strided_slice %70 {offsets = [0, 0], sizes = [16, 64], strides = [1, 1]} : vector<16x128xf32> to vector<16x64xf32>
    %72 = vector.extract_strided_slice %70 {offsets = [0, 64], sizes = [16, 64], strides = [1, 1]} : vector<16x128xf32> to vector<16x64xf32>
    %cst_24 = arith.constant 5.000000e-01 : f32
    %73 = vector.broadcast %cst_24 : f32 to vector<16x64xf32>
    %74 = arith.mulf %73, %72 : vector<16x64xf32>
    %75 = math.exp %74 : vector<16x64xf32>
    %c0_25 = arith.constant 0 : index
    %c0_26 = arith.constant 0 : index
    %76 = vector.load %arg2[%c0_25, %c0_26] : memref<16x64xf32, #tpu.memory_space<vmem>>, vector<16x64xf32>
    %77 = arith.mulf %76, %75 : vector<16x64xf32>
    %78 = arith.addf %77, %71 : vector<16x64xf32>
    %79 = math.tanh %78 : vector<16x64xf32>
    %c0_27 = arith.constant 0 : index
    %c0_28 = arith.constant 0 : index
    %80 = vector.load %arg6[%c0_27, %c0_28] : memref<64x32xf32, #tpu.memory_space<vmem>>, vector<64x32xf32>
    %cst_29 = arith.constant dense<0.000000e+00> : vector<16x32xf32>
    %81 = tpu.matmul %79, %80, %cst_29 {dimension_numbers = #tpu.dot_dimension_numbers<[1], [0], [0], [1], [0, 0, 1, 1], [], []>} : vector<16x64xf32>, vector<64x32xf32>, vector<16x32xf32> -> vector<16x32xf32>
    %82 = arith.addf %81, %12 : vector<16x32xf32>
    %83 = vector.broadcast %8 : vector<1x32xf32> to vector<16x32xf32>
    %84 = arith.addf %82, %83 : vector<16x32xf32>
    %cst_30 = arith.constant 0.000000e+00 : f32
    %85 = vector.broadcast %cst_30 : f32 to vector<16x96xf32>
    %86 = tpu.concatenate %84, %71, %75, %85 in 1 : vector<16x32xf32>, vector<16x64xf32>, vector<16x64xf32>, vector<16x96xf32> -> vector<16x256xf32>
    %c0_31 = arith.constant 0 : index
    %c0_32 = arith.constant 0 : index
    %87 = vector.load %arg9[%c0_31, %c0_32] : memref<16x256xf32, #tpu.memory_space<vmem>>, vector<16x256xf32>
    tpu.vector_store %arg9[%c0_31, %c0_32], %86 {strides = array<i32>} : memref<16x256xf32, #tpu.memory_space<vmem>>, vector<16x256xf32>,
    return
  }
  func.func @transform_0(%arg0: i32) -> (i32, i32) {
    %c0_i32 = arith.constant 0 : i32
    %c0_i32_0 = arith.constant 0 : i32
    return %arg0, %c0_i32 : i32, i32
  }
  func.func @transform_1(%arg0: i32) -> (i32, i32) {
    %c0_i32 = arith.constant 0 : i32
    %c0_i32_0 = arith.constant 0 : i32
    return %arg0, %c0_i32 : i32, i32
  }
  func.func @transform_2(%arg0: i32) -> (i32, i32) {
    %c0_i32 = arith.constant 0 : i32
    %c0_i32_0 = arith.constant 0 : i32
    %c0_i32_1 = arith.constant 0 : i32
    return %c0_i32, %c0_i32_0 : i32, i32
  }
  func.func @transform_3(%arg0: i32) -> (i32, i32) {
    %c0_i32 = arith.constant 0 : i32
    %c0_i32_0 = arith.constant 0 : i32
    %c0_i32_1 = arith.constant 0 : i32
    return %c0_i32, %c0_i32_0 : i32, i32
  }
  func.func @transform_4(%arg0: i32) -> (i32, i32) {
    %c0_i32 = arith.constant 0 : i32
    %c0_i32_0 = arith.constant 0 : i32
    %c0_i32_1 = arith.constant 0 : i32
    return %c0_i32, %c0_i32_0 : i32, i32
  }
  func.func @transform_5(%arg0: i32) -> (i32, i32) {
    %c0_i32 = arith.constant 0 : i32
    %c0_i32_0 = arith.constant 0 : i32
    %c0_i32_1 = arith.constant 0 : i32
    return %c0_i32, %c0_i32_0 : i32, i32
  }
  func.func @transform_6(%arg0: i32) -> (i32, i32) {
    %c0_i32 = arith.constant 0 : i32
    %c0_i32_0 = arith.constant 0 : i32
    %c0_i32_1 = arith.constant 0 : i32
    return %c0_i32, %c0_i32_0 : i32, i32
  }
  func.func @transform_7(%arg0: i32) -> (i32, i32) {
    %c0_i32 = arith.constant 0 : i32
    %c0_i32_0 = arith.constant 0 : i32
    %c0_i32_1 = arith.constant 0 : i32
    return %c0_i32, %c0_i32_0 : i32, i32
  }
  func.func @transform_8(%arg0: i32) -> (i32, i32) {
    %c0_i32 = arith.constant 0 : i32
    %c0_i32_0 = arith.constant 0 : i32
    return %arg0, %c0_i32 : i32, i32
  }
}

module attributes {stable_mosaic.version = 11 : i64} {
  func.func @variation_kernel(%arg0: i32, %arg1: memref<16x32xf32, #tpu.memory_space<vmem>>, %arg2: memref<16x64xf32, #tpu.memory_space<vmem>>, %arg3: memref<32x64xf32, #tpu.memory_space<vmem>>, %arg4: memref<64x64xf32, #tpu.memory_space<vmem>>, %arg5: memref<64x128xf32, #tpu.memory_space<vmem>>, %arg6: memref<64x32xf32, #tpu.memory_space<vmem>>, %arg7: memref<32x32xf32, #tpu.memory_space<vmem>>, %arg8: memref<8x128xf32, #tpu.memory_space<vmem>>, %arg9: memref<16x256xf32, #tpu.memory_space<vmem>>) attributes {dimension_semantics = [#tpu.dimension_semantics<parallel>], iteration_bounds = array<i64: 1>, scalar_prefetch = 0 : i64, scratch_operands = 0 : i64, tpu.core_type = #tpu.core_type<tc>, window_params = [{transform_indices = @transform_0, window_bounds = array<i64: 16, 32>}, {transform_indices = @transform_1, window_bounds = array<i64: 16, 64>}, {pipeline_mode = #tpu.pipeline_mode<synchronous>, transform_indices = @transform_2, window_bounds = array<i64: 32, 64>}, {pipeline_mode = #tpu.pipeline_mode<synchronous>, transform_indices = @transform_3, window_bounds = array<i64: 64, 64>}, {pipeline_mode = #tpu.pipeline_mode<synchronous>, transform_indices = @transform_4, window_bounds = array<i64: 64, 128>}, {pipeline_mode = #tpu.pipeline_mode<synchronous>, transform_indices = @transform_5, window_bounds = array<i64: 64, 32>}, {pipeline_mode = #tpu.pipeline_mode<synchronous>, transform_indices = @transform_6, window_bounds = array<i64: 32, 32>}, {pipeline_mode = #tpu.pipeline_mode<synchronous>, transform_indices = @transform_7, window_bounds = array<i64: 8, 128>}, {transform_indices = @transform_8, window_bounds = array<i64: 16, 256>}]} {
    %c0 = arith.constant 0 : index
    %c0_0 = arith.constant 0 : index
    %0 = vector.load %arg8[%c0, %c0_0] : memref<8x128xf32, #tpu.memory_space<vmem>>, vector<8x128xf32>
    %1 = vector.extract_strided_slice %0 {offsets = [0, 0], sizes = [1, 64], strides = [1, 1]} : vector<8x128xf32> to vector<1x64xf32>
    %2 = vector.extract_strided_slice %0 {offsets = [1, 0], sizes = [1, 64], strides = [1, 1]} : vector<8x128xf32> to vector<1x64xf32>
    %3 = vector.extract_strided_slice %0 {offsets = [2, 0], sizes = [1, 64], strides = [1, 1]} : vector<8x128xf32> to vector<1x64xf32>
    %4 = vector.extract_strided_slice %0 {offsets = [3, 0], sizes = [1, 64], strides = [1, 1]} : vector<8x128xf32> to vector<1x64xf32>
    %5 = vector.extract_strided_slice %0 {offsets = [4, 0], sizes = [1, 64], strides = [1, 1]} : vector<8x128xf32> to vector<1x64xf32>
    %6 = vector.extract_strided_slice %0 {offsets = [5, 0], sizes = [1, 64], strides = [1, 1]} : vector<8x128xf32> to vector<1x64xf32>
    %7 = vector.extract_strided_slice %0 {offsets = [6, 0], sizes = [1, 128], strides = [1, 1]} : vector<8x128xf32> to vector<1x128xf32>
    %8 = vector.extract_strided_slice %0 {offsets = [7, 0], sizes = [1, 32], strides = [1, 1]} : vector<8x128xf32> to vector<1x32xf32>
    %c0_1 = arith.constant 0 : index
    %c0_2 = arith.constant 0 : index
    %9 = vector.load %arg1[%c0_1, %c0_2] : memref<16x32xf32, #tpu.memory_space<vmem>>, vector<16x32xf32>
    %10 = math.tanh %9 : vector<16x32xf32>
    %c0_3 = arith.constant 0 : index
    %c0_4 = arith.constant 0 : index
    %11 = vector.load %arg7[%c0_3, %c0_4] : memref<32x32xf32, #tpu.memory_space<vmem>>, vector<32x32xf32>
    %cst = arith.constant dense<0.000000e+00> : vector<16x32xf32>
    %12 = tpu.matmul %10, %11, %cst {dimension_numbers = #tpu.dot_dimension_numbers<[1], [0], [0], [1], [0, 0, 1, 1], [], []>} : vector<16x32xf32>, vector<32x32xf32>, vector<16x32xf32> -> vector<16x32xf32>
    %c0_5 = arith.constant 0 : index
    %c0_6 = arith.constant 0 : index
    %13 = vector.load %arg3[%c0_5, %c0_6] : memref<32x64xf32, #tpu.memory_space<vmem>>, vector<32x64xf32>
    %cst_7 = arith.constant dense<0.000000e+00> : vector<16x64xf32>
    %14 = tpu.matmul %9, %13, %cst_7 {dimension_numbers = #tpu.dot_dimension_numbers<[1], [0], [0], [1], [0, 0, 1, 1], [], []>} : vector<16x32xf32>, vector<32x64xf32>, vector<16x64xf32> -> vector<16x64xf32>
    %15 = vector.broadcast %1 : vector<1x64xf32> to vector<16x64xf32>
    %16 = arith.addf %14, %15 : vector<16x64xf32>
    %cst_8 = arith.constant dense<0.000000e+00> : vector<16xf32>
    %17 = vector.multi_reduction <add>, %16, %cst_8 [1] : vector<16x64xf32> to vector<16xf32>
    %18 = vector.shape_cast %17 : vector<16xf32> to vector<16x1xf32>
    %cst_9 = arith.constant 6.400000e+01 : f32
    %19 = vector.broadcast %cst_9 : f32 to vector<16x1xf32>
    %20 = arith.divf %18, %19 : vector<16x1xf32>
    %21 = vector.broadcast %20 : vector<16x1xf32> to vector<16x64xf32>
    %22 = arith.subf %16, %21 : vector<16x64xf32>
    %23 = arith.mulf %22, %22 : vector<16x64xf32>
    %cst_10 = arith.constant dense<0.000000e+00> : vector<16xf32>
    %24 = vector.multi_reduction <add>, %23, %cst_10 [1] : vector<16x64xf32> to vector<16xf32>
    %25 = vector.shape_cast %24 : vector<16xf32> to vector<16x1xf32>
    %cst_11 = arith.constant 6.400000e+01 : f32
    %26 = vector.broadcast %cst_11 : f32 to vector<16x1xf32>
    %27 = arith.divf %25, %26 : vector<16x1xf32>
    %cst_12 = arith.constant 9.99999974E-6 : f32
    %28 = vector.broadcast %cst_12 : f32 to vector<16x1xf32>
    %29 = arith.addf %27, %28 : vector<16x1xf32>
    %30 = math.rsqrt %29 : vector<16x1xf32>
    %31 = vector.broadcast %20 : vector<16x1xf32> to vector<16x64xf32>
    %32 = arith.subf %16, %31 : vector<16x64xf32>
    %33 = vector.broadcast %30 : vector<16x1xf32> to vector<16x64xf32>
    %34 = arith.mulf %32, %33 : vector<16x64xf32>
    %35 = vector.broadcast %2 : vector<1x64xf32> to vector<16x64xf32>
    %36 = arith.mulf %34, %35 : vector<16x64xf32>
    %37 = vector.broadcast %3 : vector<1x64xf32> to vector<16x64xf32>
    %38 = arith.addf %36, %37 : vector<16x64xf32>
    %39 = math.tanh %38 : vector<16x64xf32>
    %c0_13 = arith.constant 0 : index
    %c0_14 = arith.constant 0 : index
    %40 = vector.load %arg4[%c0_13, %c0_14] : memref<64x64xf32, #tpu.memory_space<vmem>>, vector<64x64xf32>
    %cst_15 = arith.constant dense<0.000000e+00> : vector<16x64xf32>
    %41 = tpu.matmul %39, %40, %cst_15 {dimension_numbers = #tpu.dot_dimension_numbers<[1], [0], [0], [1], [0, 0, 1, 1], [], []>} : vector<16x64xf32>, vector<64x64xf32>, vector<16x64xf32> -> vector<16x64xf32>
    %42 = vector.broadcast %4 : vector<1x64xf32> to vector<16x64xf32>
    %43 = arith.addf %41, %42 : vector<16x64xf32>
    %cst_16 = arith.constant dense<0.000000e+00> : vector<16xf32>
    %44 = vector.multi_reduction <add>, %43, %cst_16 [1] : vector<16x64xf32> to vector<16xf32>
    %45 = vector.shape_cast %44 : vector<16xf32> to vector<16x1xf32>
    %cst_17 = arith.constant 6.400000e+01 : f32
    %46 = vector.broadcast %cst_17 : f32 to vector<16x1xf32>
    %47 = arith.divf %45, %46 : vector<16x1xf32>
    %48 = vector.broadcast %47 : vector<16x1xf32> to vector<16x64xf32>
    %49 = arith.subf %43, %48 : vector<16x64xf32>
    %50 = arith.mulf %49, %49 : vector<16x64xf32>
    %cst_18 = arith.constant dense<0.000000e+00> : vector<16xf32>
    %51 = vector.multi_reduction <add>, %50, %cst_18 [1] : vector<16x64xf32> to vector<16xf32>
    %52 = vector.shape_cast %51 : vector<16xf32> to vector<16x1xf32>
    %cst_19 = arith.constant 6.400000e+01 : f32
    %53 = vector.broadcast %cst_19 : f32 to vector<16x1xf32>
    %54 = arith.divf %52, %53 : vector<16x1xf32>
    %cst_20 = arith.constant 9.99999974E-6 : f32
    %55 = vector.broadcast %cst_20 : f32 to vector<16x1xf32>
    %56 = arith.addf %54, %55 : vector<16x1xf32>
    %57 = math.rsqrt %56 : vector<16x1xf32>
    %58 = vector.broadcast %47 : vector<16x1xf32> to vector<16x64xf32>
    %59 = arith.subf %43, %58 : vector<16x64xf32>
    %60 = vector.broadcast %57 : vector<16x1xf32> to vector<16x64xf32>
    %61 = arith.mulf %59, %60 : vector<16x64xf32>
    %62 = vector.broadcast %5 : vector<1x64xf32> to vector<16x64xf32>
    %63 = arith.mulf %61, %62 : vector<16x64xf32>
    %64 = vector.broadcast %6 : vector<1x64xf32> to vector<16x64xf32>
    %65 = arith.addf %63, %64 : vector<16x64xf32>
    %66 = math.tanh %65 : vector<16x64xf32>
    %c0_21 = arith.constant 0 : index
    %c0_22 = arith.constant 0 : index
    %67 = vector.load %arg5[%c0_21, %c0_22] : memref<64x128xf32, #tpu.memory_space<vmem>>, vector<64x128xf32>
    %cst_23 = arith.constant dense<0.000000e+00> : vector<16x128xf32>
    %68 = tpu.matmul %66, %67, %cst_23 {dimension_numbers = #tpu.dot_dimension_numbers<[1], [0], [0], [1], [0, 0, 1, 1], [], []>} : vector<16x64xf32>, vector<64x128xf32>, vector<16x128xf32> -> vector<16x128xf32>
    %69 = vector.broadcast %7 : vector<1x128xf32> to vector<16x128xf32>
    %70 = arith.addf %68, %69 : vector<16x128xf32>
    %71 = vector.extract_strided_slice %70 {offsets = [0, 0], sizes = [16, 64], strides = [1, 1]} : vector<16x128xf32> to vector<16x64xf32>
    %72 = vector.extract_strided_slice %70 {offsets = [0, 64], sizes = [16, 64], strides = [1, 1]} : vector<16x128xf32> to vector<16x64xf32>
    %cst_24 = arith.constant 5.000000e-01 : f32
    %73 = vector.broadcast %cst_24 : f32 to vector<16x64xf32>
    %74 = arith.mulf %73, %72 : vector<16x64xf32>
    %75 = math.exp %74 : vector<16x64xf32>
    %c0_25 = arith.constant 0 : index
    %c0_26 = arith.constant 0 : index
    %76 = vector.load %arg2[%c0_25, %c0_26] : memref<16x64xf32, #tpu.memory_space<vmem>>, vector<16x64xf32>
    %77 = arith.mulf %76, %75 : vector<16x64xf32>
    %78 = arith.addf %77, %71 : vector<16x64xf32>
    %79 = math.tanh %78 : vector<16x64xf32>
    %c0_27 = arith.constant 0 : index
    %c0_28 = arith.constant 0 : index
    %80 = vector.load %arg6[%c0_27, %c0_28] : memref<64x32xf32, #tpu.memory_space<vmem>>, vector<64x32xf32>
    %cst_29 = arith.constant dense<0.000000e+00> : vector<16x32xf32>
    %81 = tpu.matmul %79, %80, %cst_29 {dimension_numbers = #tpu.dot_dimension_numbers<[1], [0], [0], [1], [0, 0, 1, 1], [], []>} : vector<16x64xf32>, vector<64x32xf32>, vector<16x32xf32> -> vector<16x32xf32>
    %82 = arith.addf %81, %12 : vector<16x32xf32>
    %83 = vector.broadcast %8 : vector<1x32xf32> to vector<16x32xf32>
    %84 = arith.addf %82, %83 : vector<16x32xf32>
    %cst_30 = arith.constant 0.000000e+00 : f32
    %85 = vector.broadcast %cst_30 : f32 to vector<16x96xf32>
    %86 = tpu.concatenate %84, %71, %75, %85 in 1 : vector<16x32xf32>, vector<16x64xf32>, vector<16x64xf32>, vector<16x96xf32> -> vector<16x256xf32>
    %c0_31 = arith.constant 0 : index
    %c0_32 = arith.constant 0 : index
    %87 = vector.load %arg9[%c0_31, %c0_32] : memref<16x256xf32, #tpu.memory_space<vmem>>, vector<16x256xf32>
    tpu.vector_store %arg9[%c0_31, %c0_32], %86 {strides = array<i32>} : memref<16x256xf32, #tpu.memory_space<vmem>>, vector<16x256xf32>,
    return
  }
  func.func @transform_0(%arg0: i32) -> (i32, i32) {
    %c0_i32 = arith.constant 0 : i32
    %c0_i32_0 = arith.constant 0 : i32
    return %arg0, %c0_i32 : i32, i32
  }
  func.func @transform_1(%arg0: i32) -> (i32, i32) {
    %c0_i32 = arith.constant 0 : i32
    %c0_i32_0 = arith.constant 0 : i32
    return %arg0, %c0_i32 : i32, i32
  }
  func.func @transform_2(%arg0: i32) -> (i32, i32) {
    %c0_i32 = arith.constant 0 : i32
    %c0_i32_0 = arith.constant 0 : i32
    %c0_i32_1 = arith.constant 0 : i32
    return %c0_i32, %c0_i32_0 : i32, i32
  }
  func.func @transform_3(%arg0: i32) -> (i32, i32) {
    %c0_i32 = arith.constant 0 : i32
    %c0_i32_0 = arith.constant 0 : i32
    %c0_i32_1 = arith.constant 0 : i32
    return %c0_i32, %c0_i32_0 : i32, i32
  }
  func.func @transform_4(%arg0: i32) -> (i32, i32) {
    %c0_i32 = arith.constant 0 : i32
    %c0_i32_0 = arith.constant 0 : i32
    %c0_i32_1 = arith.constant 0 : i32
    return %c0_i32, %c0_i32_0 : i32, i32
  }
  func.func @transform_5(%arg0: i32) -> (i32, i32) {
    %c0_i32 = arith.constant 0 : i32
    %c0_i32_0 = arith.constant 0 : i32
    %c0_i32_1 = arith.constant 0 : i32
    return %c0_i32, %c0_i32_0 : i32, i32
  }
  func.func @transform_6(%arg0: i32) -> (i32, i32) {
    %c0_i32 = arith.constant 0 : i32
    %c0_i32_0 = arith.constant 0 : i32
    %c0_i32_1 = arith.constant 0 : i32
    return %c0_i32, %c0_i32_0 : i32, i32
  }
  func.func @transform_7(%arg0: i32) -> (i32, i32) {
    %c0_i32 = arith.constant 0 : i32
    %c0_i32_0 = arith.constant 0 : i32
    %c0_i32_1 = arith.constant 0 : i32
    return %c0_i32, %c0_i32_0 : i32, i32
  }
  func.func @transform_8(%arg0: i32) -> (i32, i32) {
    %c0_i32 = arith.constant 0 : i32
    %c0_i32_0 = arith.constant 0 : i32
    return %arg0, %c0_i32 : i32, i32
  }
}

</mosaic_0001>

<llo_original>
// kernel: _variation_pallas.1
$region0: #{_variation_pallas.1}
  #allocation0 [shape = 'u32[]', space=smem, size = 0x4, offset = 0x4, fixed_abs, tag = 'smem constant byte address 0x4 - core index']
  #allocation1 [shape = 'u32[72,128]{1,0:T(1,128)}', space=vmem, size = 0x9000, scoped, tag = 'internal scratch']
  %s0 = inlined_call_operand.hbm [shape: f32[16,32], index: 0, kind: input, shape index: {}]
  %s1 = inlined_call_operand.hbm [shape: f32[16,64], index: 1, kind: input, shape index: {}]
  %s2 = inlined_call_operand.vmem [shape: f32[32,64], index: 2, kind: input, shape index: {}]
  %s3 = inlined_call_operand.vmem [shape: f32[64,64], index: 3, kind: input, shape index: {}]
  %s4 = inlined_call_operand.hbm [shape: f32[64,128], index: 4, kind: input, shape index: {}]
  %s5 = inlined_call_operand.vmem [shape: f32[64,32], index: 5, kind: input, shape index: {}]
  %s6 = inlined_call_operand.hbm [shape: f32[32,32], index: 6, kind: input, shape index: {}]
  %s7 = inlined_call_operand.hbm [shape: f32[8,128], index: 7, kind: input, shape index: {}]
  %s8 = inlined_call_operand.hbm [shape: f32[16,256], index: 8, kind: output, shape index: {}]
  %s9 = sld [smem:[#allocation0]]
  $region62: #{_variation_pallas.1} parent=0
    _
  %s11 = ssub.s32 1, %s9
  %s12 = scalar_select 0, %s11, %s9
  $region1: #{_variation_pallas.1} parent=0
    #allocation2 [shape = 'u8[8192]{0}', space=vmem, size = 0x2000, scoped, tag = 'input window, operand 0, single buffered']
    #allocation3 [shape = 's32[1]{0}', space=sflag, size = 0x4, scoped, tag = 'scoped memory for _variation_pallas.1']
    #allocation4 [shape = 's32[1]{0}', space=sflag, size = 0x4, scoped, tag = 'scoped memory for _variation_pallas.1']
    #allocation5 [shape = 'u8[8192]{0}', space=vmem, size = 0x2000, scoped, tag = 'input window, operand 1, single buffered']
    #allocation6 [shape = 's32[1]{0}', space=sflag, size = 0x4, scoped, tag = 'scoped memory for _variation_pallas.1']
    #allocation7 [shape = 'u8[32768]{0}', space=vmem, size = 0x8000, scoped, tag = 'input window, operand 4, single buffered']
    #allocation8 [shape = 'u8[16384]{0}', space=vmem, size = 0x4000, scoped, tag = 'input window, operand 6, single buffered']
    #allocation9 [shape = 's32[1]{0}', space=sflag, size = 0x4, scoped, tag = 'scoped memory for _variation_pallas.1']
    #allocation10 [shape = 'u8[4096]{0}', space=vmem, size = 0x1000, scoped, tag = 'input window, operand 7, single buffered']
    #allocation11 [shape = 'u8[16384]{0}', space=vmem, size = 0x4000, scoped, tag = 'output window, operand 0, single buffered']
    %13 = vsyncpa [#allocation3], 0
    %14 = vsyncpa [#allocation6], 0
    %15 = vsyncpa [#allocation9], 0
    %16 = vsyncpa [#allocation4], 0
    // Predicated region
    $region2: #{_variation_pallas.1} parent=1 // pred_check
      _
    $region3: #{_variation_pallas.1} parent=1 // pred_check_branch
      %18 = sbr.rel (0) target = $region5
    $region4: #{_variation_pallas.1} parent=1 // pred_region
      %20 = vsyncadd [#allocation3], 0
      %s21 = sshll.u32 %s0, 4
      %s22 = int_to_ptr.hbm [resolvable:$true] %s21
      %s23 = sshll.u32 [#allocation2], 4
      %s24 = int_to_ptr.vmem [resolvable:$true] %s23
      %29 = dma.hbm_to_vmem [thread:$0]  %s22, 256, %s24, [#allocation3], 128, 128, 8
    $region5: #{_variation_pallas.1} parent=1 // pred_fallthru
      _
    // Predicated region
    $region6: #{_variation_pallas.1} parent=1 // pred_check
      _
    $region7: #{_variation_pallas.1} parent=1 // pred_check_branch
      %31 = sbr.rel (0) target = $region9
    $region8: #{_variation_pallas.1} parent=1 // pred_region
      %33 = vsyncadd [#allocation6], 0
      %s34 = sshll.u32 %s1, 4
      %s35 = int_to_ptr.hbm [resolvable:$true] %s34
      %s36 = sshll.u32 [#allocation5], 4
      %s37 = int_to_ptr.vmem [resolvable:$true] %s36
      %42 = dma.hbm_to_vmem [thread:$0]  %s35, 256, %s37, [#allocation6], 128, 128, 8
    $region9: #{_variation_pallas.1} parent=1 // pred_fallthru
      _
    // Predicated region
    $region10: #{_variation_pallas.1} parent=1 // pred_check
      _
    $region11: #{_variation_pallas.1} parent=1 // pred_check_branch
      %44 = sbr.rel (0) target = $region13
    $region12: #{_variation_pallas.1} parent=1 // pred_region
      _
    $region13: #{_variation_pallas.1} parent=1 // pred_fallthru
      _
    // Predicated region
    $region14: #{_variation_pallas.1} parent=1 // pred_check
      _
    $region15: #{_variation_pallas.1} parent=1 // pred_check_branch
      %46 = sbr.rel (0) target = $region17
    $region16: #{_variation_pallas.1} parent=1 // pred_region
      _
    $region17: #{_variation_pallas.1} parent=1 // pred_fallthru
      _
    // Predicated region
    $region18: #{_variation_pallas.1} parent=1 // pred_check
      _
    $region19: #{_variation_pallas.1} parent=1 // pred_check_branch
      %48 = sbr.rel (0) target = $region21
    $region20: #{_variation_pallas.1} parent=1 // pred_region
      %50 = vsyncadd [#allocation6], 0
      %s51 = sshll.u32 %s4, 4
      %s52 = int_to_ptr.hbm [resolvable:$true] %s51
      %s53 = sshll.u32 [#allocation7], 4
      %s54 = int_to_ptr.vmem [resolvable:$true] %s53
      %59 = dma.hbm_to_vmem [thread:$0]  %s52, 1024, %s54, [#allocation6], 128, 128, 8
    $region21: #{_variation_pallas.1} parent=1 // pred_fallthru
      _
    // Predicated region
    $region22: #{_variation_pallas.1} parent=1 // pred_check
      _
    $region23: #{_variation_pallas.1} parent=1 // pred_check_branch
      %61 = sbr.rel (0) target = $region25
    $region24: #{_variation_pallas.1} parent=1 // pred_region
      _
    $region25: #{_variation_pallas.1} parent=1 // pred_fallthru
      _
    // Predicated region
    $region26: #{_variation_pallas.1} parent=1 // pred_check
      _
    $region27: #{_variation_pallas.1} parent=1 // pred_check_branch
      %63 = sbr.rel (0) target = $region29
    $region28: #{_variation_pallas.1} parent=1 // pred_region
      %65 = vsyncadd [#allocation9], 0
      %s66 = sshll.u32 %s6, 4
      %s67 = int_to_ptr.hbm [resolvable:$true] %s66
      %s68 = sshll.u32 [#allocation8], 4
      %s69 = int_to_ptr.vmem [resolvable:$true] %s68
      %74 = dma.hbm_to_vmem [thread:$0]  %s67, 512, %s69, [#allocation9], 128, 128, 8
    $region29: #{_variation_pallas.1} parent=1 // pred_fallthru
      _
    // Predicated region
    $region30: #{_variation_pallas.1} parent=1 // pred_check
      _
    $region31: #{_variation_pallas.1} parent=1 // pred_check_branch
      %76 = sbr.rel (0) target = $region33
    $region32: #{_variation_pallas.1} parent=1 // pred_region
      %78 = vsyncadd [#allocation9], 0
      %s80 = sshll.u32 %s7, 4
      %s81 = int_to_ptr.hbm [resolvable:$true] %s80
      %s82 = sshll.u32 [#allocation10], 4
      %s83 = int_to_ptr.vmem [resolvable:$true] %s82
      %85 = dma.hbm_to_vmem [thread:$0]  %s81, 128, %s83, [#allocation9]
    $region33: #{_variation_pallas.1} parent=1 // pred_fallthru
      _
    // Predicated region
    $region34: #{_variation_pallas.1} parent=1 // pred_check
      _
    $region35: #{_variation_pallas.1} parent=1 // pred_check_branch
      %87 = sbr.rel (0) target = $region37
    $region36: #{_variation_pallas.1} parent=1 // pred_region
      %89 = dma.done [#allocation3], 256
    $region37: #{_variation_pallas.1} parent=1 // pred_fallthru
      _
    // Predicated region
    $region38: #{_variation_pallas.1} parent=1 // pred_check
      _
    $region39: #{_variation_pallas.1} parent=1 // pred_check_branch
      %91 = sbr.rel (0) target = $region41
    $region40: #{_variation_pallas.1} parent=1 // pred_region
      %93 = dma.done [#allocation6], 256
    $region41: #{_variation_pallas.1} parent=1 // pred_fallthru
      _
    // Predicated region
    $region42: #{_variation_pallas.1} parent=1 // pred_check
      _
    $region43: #{_variation_pallas.1} parent=1 // pred_check_branch
      %95 = sbr.rel (0) target = $region45
    $region44: #{_variation_pallas.1} parent=1 // pred_region
      %97 = dma.done [#allocation6], 1024
    $region45: #{_variation_pallas.1} parent=1 // pred_fallthru
      _
    // Predicated region
    $region46: #{_variation_pallas.1} parent=1 // pred_check
      _
    $region47: #{_variation_pallas.1} parent=1 // pred_check_branch
      %99 = sbr.rel (0) target = $region49
    $region48: #{_variation_pallas.1} parent=1 // pred_region
      %101 = dma.done [#allocation9], 512
    $region49: #{_variation_pallas.1} parent=1 // pred_fallthru
      _
    // Predicated region
    $region50: #{_variation_pallas.1} parent=1 // pred_check
      _
    $region51: #{_variation_pallas.1} parent=1 // pred_check_branch
      %103 = sbr.rel (0) target = $region53
    $region52: #{_variation_pallas.1} parent=1 // pred_region
      %105 = dma.done [#allocation9], 128
    $region53: #{_variation_pallas.1} parent=1 // pred_fallthru
      _
    %v106 = vld [vmem:[#allocation10] sm:$0xff]
    %v107 = vld [vmem:[#allocation2] sm:$0xff]
    %v108 = vld [vmem:[#allocation2 + $0x8] sm:$0xff]
    %v109 = vtanh.pop %v107
    %v110 = vtanh.pop %v108
    %v111 = vld [vmem:[#allocation8] sm:$0xff]
    %v112 = vld [vmem:[#allocation8 + $0x8] sm:$0xff]
    %v113 = vld [vmem:[#allocation8 + $0x10] sm:$0xff]
    %v114 = vld [vmem:[#allocation8 + $0x18] sm:$0xff]
    %vm115 = vcmask 261120
    %v117 = vsel %vm115, %v109, 0
    %v120 = vsel %vm115, %v110, 0
    %122 = vmatpush.msra.mxu0 0.0
    %123 = vmatpush.msra.mxu0 0.0
    %124 = vmatpush.msra.mxu0 0.0
    %125 = vmatpush.msra.mxu0 0.0
    %126 = vmatpush.msra.mxu0 0.0
    %127 = vmatpush.msra.mxu0 0.0
    %128 = vmatpush.msra.mxu0 0.0
    %129 = vmatpush.msra.mxu0 0.0
    %130 = vmatpush.msra.mxu0 0.0
    %131 = vmatpush.msra.mxu0 0.0
    %132 = vmatpush.msra.mxu0 0.0
    %133 = vmatpush.msra.mxu0 0.0
    %134 = vmatpush.msra.mxu0 %v114
    %135 = vmatpush.msra.mxu0 %v113
    %136 = vmatpush.msra.mxu0 %v112
    %137 = vmatpush.msra.mxu0 %v111
    %138 = vmatmul.f32.gmra.mxu0 %v117
    %v139 = vpop.f32.mrf.mxu0
    %v140 = vadd.f32 0.0, %v139
    %141 = vmatmul.f32.gmra.mxu0 %v120
    %v142 = vpop.f32.mrf.mxu0
    %v143 = vadd.f32 0.0, %v142
    %144 = vdwg.mxu0
    %v145 = vld [vmem:[%s2] sm:$0xff]
    %v146 = vld [vmem:[%s2 + $0x8] sm:$0xff]
    %v147 = vld [vmem:[%s2 + $0x10] sm:$0xff]
    %v148 = vld [vmem:[%s2 + $0x18] sm:$0xff]
    %v149 = vperm.slane %v106, 0
    %v151 = vsel %vm115, %v107, 0
    %v154 = vsel %vm115, %v108, 0
    %156 = vmatpush.msra.mxu0 0.0
    %157 = vmatpush.msra.mxu0 0.0
    %158 = vmatpush.msra.mxu0 0.0
    %159 = vmatpush.msra.mxu0 0.0
    %160 = vmatpush.msra.mxu0 0.0
    %161 = vmatpush.msra.mxu0 0.0
    %162 = vmatpush.msra.mxu0 0.0
    %163 = vmatpush.msra.mxu0 0.0
    %164 = vmatpush.msra.mxu0 0.0
    %165 = vmatpush.msra.mxu0 0.0
    %166 = vmatpush.msra.mxu0 0.0
    %167 = vmatpush.msra.mxu0 0.0
    %168 = vmatpush.msra.mxu0 %v148
    %169 = vmatpush.msra.mxu0 %v147
    %170 = vmatpush.msra.mxu0 %v146
    %171 = vmatpush.msra.mxu0 %v145
    %172 = vmatmul.f32.gmra.mxu0 %v151
    %v173 = vpop.f32.mrf.mxu0
    %v174 = vadd.f32 %v149, %v173
    %175 = vmatmul.f32.gmra.mxu0 %v154
    %v176 = vpop.f32.mrf.mxu0
    %v177 = vadd.f32 %v149, %v176
    %178 = vdwg.mxu0
    %vm179 = vcmask 523264
    %v180 = vsel %vm179, %v174, 0.0
    %181 = vadd.xlane.f32.xlu0 %v180
    %v182 = vpop.xlane.xlu0 %181
    %v183 = vsel %vm179, %v177, 0.0
    %184 = vadd.xlane.f32.xlu0 %v183
    %v185 = vpop.xlane.xlu0 %184
    %v186 = vrcp.pop 64.0
    %v187 = vmul.f32 64.0, %v186
    %v188 = vsub.f32 1.0, %v187
    %v189 = vmul.f32 %v186, %v188
    %v190 = vadd.f32 %v186, %v189
    %vm191 = vweird.f32 %v186
    %v192 = vsel %vm191, %v186, %v190
    %v193 = vmul.f32 %v182, %v192
    %v194 = vmul.f32 %v185, %v192
    %v195 = vsub.f32 %v174, %v193
    %v196 = vsub.f32 %v177, %v194
    %v197 = vmul.f32 %v195, %v195
    %v198 = vmul.f32 %v196, %v196
    %v199 = vsel %vm179, %v197, 0.0
    %200 = vadd.xlane.f32.xlu0 %v199
    %v201 = vpop.xlane.xlu0 %200
    %v202 = vsel %vm179, %v198, 0.0
    %203 = vadd.xlane.f32.xlu0 %v202
    %v204 = vpop.xlane.xlu0 %203
    %v205 = vmul.f32 %v201, %v192
    %v206 = vmul.f32 %v204, %v192
    %v207 = vadd.f32 %v205, 1e-05
    %v208 = vadd.f32 %v206, 1e-05
    %v209 = vrsqrt.pop %v207
    %v210 = vmul.f32 %v209, %v207
    %v211 = vmul.f32 %v210, %v209
    %v212 = vmul.f32 0.5, %v211
    %v213 = vsub.f32 1.5, %v212
    %v214 = vmul.f32 %v209, %v213
    %vm215 = vweird.f32 %v207
    %vm216 = vweird.f32 %v209
    %vm217 = vmor %vm215, %vm216
    %v218 = vsel %vm217, %v209, %v214
    %v219 = vrsqrt.pop %v208
    %v220 = vmul.f32 %v219, %v208
    %v221 = vmul.f32 %v220, %v219
    %v222 = vmul.f32 0.5, %v221
    %v223 = vsub.f32 1.5, %v222
    %v224 = vmul.f32 %v219, %v223
    %vm225 = vweird.f32 %v208
    %vm226 = vweird.f32 %v219
    %vm227 = vmor %vm225, %vm226
    %v228 = vsel %vm227, %v219, %v224
    %v229 = vmul.f32 %v195, %v218
    %v230 = vmul.f32 %v196, %v228
    %v231 = vperm.slane %v106, 1
    %v232 = vmul.f32 %v229, %v231
    %v233 = vmul.f32 %v230, %v231
    %v234 = vperm.slane %v106, 2
    %v235 = vadd.f32 %v232, %v234
    %v236 = vadd.f32 %v233, %v234
    %v237 = vtanh.pop %v235
    %v238 = vtanh.pop %v236
    %v239 = vld [vmem:[%s3] sm:$0xff]
    %v240 = vld [vmem:[%s3 + $0x8] sm:$0xff]
    %v241 = vld [vmem:[%s3 + $0x10] sm:$0xff]
    %v242 = vld [vmem:[%s3 + $0x18] sm:$0xff]
    %v243 = vld [vmem:[%s3 + $0x20] sm:$0xff]
    %v244 = vld [vmem:[%s3 + $0x28] sm:$0xff]
    %v245 = vld [vmem:[%s3 + $0x30] sm:$0xff]
    %v246 = vld [vmem:[%s3 + $0x38] sm:$0xff]
    %v247 = vperm.slane %v106, 3
    %v249 = vsel %vm179, %v237, 0
    %v252 = vsel %vm179, %v238, 0
    %254 = vmatpush.msra.mxu0 0.0
    %255 = vmatpush.msra.mxu0 0.0
    %256 = vmatpush.msra.mxu0 0.0
    %257 = vmatpush.msra.mxu0 0.0
    %258 = vmatpush.msra.mxu0 0.0
    %259 = vmatpush.msra.mxu0 0.0
    %260 = vmatpush.msra.mxu0 0.0
    %261 = vmatpush.msra.mxu0 0.0
    %262 = vmatpush.msra.mxu0 %v246
    %263 = vmatpush.msra.mxu0 %v245
    %264 = vmatpush.msra.mxu0 %v244
    %265 = vmatpush.msra.mxu0 %v243
    %266 = vmatpush.msra.mxu0 %v242
    %267 = vmatpush.msra.mxu0 %v241
    %268 = vmatpush.msra.mxu0 %v240
    %269 = vmatpush.msra.mxu0 %v239
    %270 = vmatmul.f32.gmra.mxu0 %v249
    %v271 = vpop.f32.mrf.mxu0
    %v272 = vadd.f32 %v247, %v271
    %273 = vmatmul.f32.gmra.mxu0 %v252
    %v274 = vpop.f32.mrf.mxu0
    %v275 = vadd.f32 %v247, %v274
    %276 = vdwg.mxu0
    %v277 = vsel %vm179, %v272, 0.0
    %278 = vadd.xlane.f32.xlu0 %v277
    %v279 = vpop.xlane.xlu0 %278
    %v280 = vsel %vm179, %v275, 0.0
    %281 = vadd.xlane.f32.xlu0 %v280
    %v282 = vpop.xlane.xlu0 %281
    %v283 = vmul.f32 %v279, %v192
    %v284 = vmul.f32 %v282, %v192
    %v285 = vsub.f32 %v272, %v283
    %v286 = vsub.f32 %v275, %v284
    %v287 = vmul.f32 %v285, %v285
    %v288 = vmul.f32 %v286, %v286
    %v289 = vsel %vm179, %v287, 0.0
    %290 = vadd.xlane.f32.xlu0 %v289
    %v291 = vpop.xlane.xlu0 %290
    %v292 = vsel %vm179, %v288, 0.0
    %293 = vadd.xlane.f32.xlu0 %v292
    %v294 = vpop.xlane.xlu0 %293
    %v295 = vmul.f32 %v291, %v192
    %v296 = vmul.f32 %v294, %v192
    %v297 = vadd.f32 %v295, 1e-05
    %v298 = vadd.f32 %v296, 1e-05
    %v299 = vrsqrt.pop %v297
    %v300 = vmul.f32 %v299, %v297
    %v301 = vmul.f32 %v300, %v299
    %v302 = vmul.f32 0.5, %v301
    %v303 = vsub.f32 1.5, %v302
    %v304 = vmul.f32 %v299, %v303
    %vm305 = vweird.f32 %v297
    %vm306 = vweird.f32 %v299
    %vm307 = vmor %vm305, %vm306
    %v308 = vsel %vm307, %v299, %v304
    %v309 = vrsqrt.pop %v298
    %v310 = vmul.f32 %v309, %v298
    %v311 = vmul.f32 %v310, %v309
    %v312 = vmul.f32 0.5, %v311
    %v313 = vsub.f32 1.5, %v312
    %v314 = vmul.f32 %v309, %v313
    %vm315 = vweird.f32 %v298
    %vm316 = vweird.f32 %v309
    %vm317 = vmor %vm315, %vm316
    %v318 = vsel %vm317, %v309, %v314
    %v319 = vmul.f32 %v285, %v308
    %v320 = vmul.f32 %v286, %v318
    %v321 = vperm.slane %v106, 4
    %v322 = vmul.f32 %v319, %v321
    %v323 = vmul.f32 %v320, %v321
    %v324 = vperm.slane %v106, 5
    %v325 = vadd.f32 %v322, %v324
    %v326 = vadd.f32 %v323, %v324
    %v327 = vtanh.pop %v325
    %v328 = vtanh.pop %v326
    %v329 = vld [vmem:[#allocation7] sm:$0xff]
    %v330 = vld [vmem:[#allocation7 + $0x8] sm:$0xff]
    %v331 = vld [vmem:[#allocation7 + $0x10] sm:$0xff]
    %v332 = vld [vmem:[#allocation7 + $0x18] sm:$0xff]
    %v333 = vld [vmem:[#allocation7 + $0x20] sm:$0xff]
    %v334 = vld [vmem:[#allocation7 + $0x28] sm:$0xff]
    %v335 = vld [vmem:[#allocation7 + $0x30] sm:$0xff]
    %v336 = vld [vmem:[#allocation7 + $0x38] sm:$0xff]
    %v337 = vperm.slane %v106, 6
    %v339 = vsel %vm179, %v327, 0
    %v342 = vsel %vm179, %v328, 0
    %344 = vmatpush.msra.mxu0 0.0
    %345 = vmatpush.msra.mxu0 0.0
    %346 = vmatpush.msra.mxu0 0.0
    %347 = vmatpush.msra.mxu0 0.0
    %348 = vmatpush.msra.mxu0 0.0
    %349 = vmatpush.msra.mxu0 0.0
    %350 = vmatpush.msra.mxu0 0.0
    %351 = vmatpush.msra.mxu0 0.0
    %352 = vmatpush.msra.mxu0 %v336
    %353 = vmatpush.msra.mxu0 %v335
    %354 = vmatpush.msra.mxu0 %v334
    %355 = vmatpush.msra.mxu0 %v333
    %356 = vmatpush.msra.mxu0 %v332
    %357 = vmatpush.msra.mxu0 %v331
    %358 = vmatpush.msra.mxu0 %v330
    %359 = vmatpush.msra.mxu0 %v329
    %360 = vmatmul.f32.gmra.mxu0 %v339
    %v361 = vpop.f32.mrf.mxu0
    %v362 = vadd.f32 %v337, %v361
    %363 = vmatmul.f32.gmra.mxu0 %v342
    %v364 = vpop.f32.mrf.mxu0
    %v365 = vadd.f32 %v337, %v364
    %366 = vdwg.mxu0
    %v367 = vmul.f32 %v362, 0.5
    %v368 = vmul.f32 %v365, 0.5
    %v369 = vmul.f32 %v367, 1.442695
    %v370 = vpow.pop %v369
    %v371 = vmul.f32 %v368, 1.442695
    %v372 = vpow.pop %v371
    %v373 = vld [vmem:[#allocation5] sm:$0xff]
    %v374 = vld [vmem:[#allocation5 + $0x8] sm:$0xff]
    %377 = vrot.lane.b32.xlu0 %v370, 64
    %v378 = vpop.permute.xlu0 %377
    %379 = vrot.lane.b32.xlu0 %v372, 64
    %v380 = vpop.permute.xlu0 %379
    %v383 = vmul.f32 %v373, %v378
    %v384 = vmul.f32 %v374, %v380
    %v385 = vadd.f32 %v383, %v362
    %v386 = vadd.f32 %v384, %v365
    %v387 = vtanh.pop %v385
    %v388 = vtanh.pop %v386
    %v389 = vld [vmem:[%s5] sm:$0xff]
    %v390 = vld [vmem:[%s5 + $0x8] sm:$0xff]
    %v391 = vld [vmem:[%s5 + $0x10] sm:$0xff]
    %v392 = vld [vmem:[%s5 + $0x18] sm:$0xff]
    %v393 = vld [vmem:[%s5 + $0x20] sm:$0xff]
    %v394 = vld [vmem:[%s5 + $0x28] sm:$0xff]
    %v395 = vld [vmem:[%s5 + $0x30] sm:$0xff]
    %v396 = vld [vmem:[%s5 + $0x38] sm:$0xff]
    %v398 = vsel %vm179, %v387, 0
    %v401 = vsel %vm179, %v388, 0
    %403 = vmatpush.msra.mxu0 0.0
    %404 = vmatpush.msra.mxu0 0.0
    %405 = vmatpush.msra.mxu0 0.0
    %406 = vmatpush.msra.mxu0 0.0
    %407 = vmatpush.msra.mxu0 0.0
    %408 = vmatpush.msra.mxu0 0.0
    %409 = vmatpush.msra.mxu0 0.0
    %410 = vmatpush.msra.mxu0 0.0
    %411 = vmatpush.msra.mxu0 %v396
    %412 = vmatpush.msra.mxu0 %v395
    %413 = vmatpush.msra.mxu0 %v394
    %414 = vmatpush.msra.mxu0 %v393
    %415 = vmatpush.msra.mxu0 %v392
    %416 = vmatpush.msra.mxu0 %v391
    %417 = vmatpush.msra.mxu0 %v390
    %418 = vmatpush.msra.mxu0 %v389
    %419 = vmatmul.f32.gmra.mxu0 %v398
    %v420 = vpop.f32.mrf.mxu0
    %v421 = vadd.f32 %v140, %v420
    %422 = vmatmul.f32.gmra.mxu0 %v401
    %v423 = vpop.f32.mrf.mxu0
    %v424 = vadd.f32 %v143, %v423
    %425 = vdwg.mxu0
    %v426 = vperm.slane %v106, 7
    %v427 = vadd.f32 %v421, %v426
    %v428 = vadd.f32 %v424, %v426
    %431 = vrot.lane.b32.xlu0 %v362, 32
    %v432 = vpop.permute.xlu0 %431
    %433 = vrot.lane.b32.xlu0 %v365, 32
    %v434 = vpop.permute.xlu0 %433
    %437 = vrot.lane.b32.xlu0 %v370, 32
    %v438 = vpop.permute.xlu0 %437
    %439 = vrot.lane.b32.xlu0 %v372, 32
    %v440 = vpop.permute.xlu0 %439
    %v443 = vsel %vm115, %v427, %v432
    %v444 = vsel %vm115, %v428, %v434
    %vm445 = vcmask 785408
    %v446 = vsel %vm445, %v443, %v438
    %v447 = vsel %vm445, %v444, %v440
    %v448 = vsel %vm115, %v438, 0.0
    %v449 = vsel %vm115, %v440, 0.0
    %450 = vst [vmem:[#allocation11] sm:$0xff] %v446
    %451 = vst [vmem:[#allocation11 + $0x8] sm:$0xff] %v448
    %452 = vst [vmem:[#allocation11 + $0x10] sm:$0xff] %v447
    %453 = vst [vmem:[#allocation11 + $0x18] sm:$0xff] %v449
    // Predicated region
    $region54: #{_variation_pallas.1} parent=1 // pred_check
      _
    $region55: #{_variation_pallas.1} parent=1 // pred_check_branch
      %455 = sbr.rel (0) target = $region57
    $region56: #{_variation_pallas.1} parent=1 // pred_region
      %457 = vsyncadd [#allocation4], 0
      %s458 = sshll.u32 [#allocation11], 4
      %s459 = int_to_ptr.vmem [resolvable:$true] %s458
      %s460 = sshll.u32 %s8, 4
      %s461 = int_to_ptr.hbm [resolvable:$true] %s460
      %466 = dma.vmem_to_hbm [thread:$0]  %s459, 512, %s461, [#allocation4], 256, 256, 16
    $region57: #{_variation_pallas.1} parent=1 // pred_fallthru
      _
    // Predicated region
    $region58: #{_variation_pallas.1} parent=1 // pred_check
      _
    $region59: #{_variation_pallas.1} parent=1 // pred_check_branch
      %468 = sbr.rel (0) target = $region61
    $region60: #{_variation_pallas.1} parent=1 // pred_region
      %470 = dma.done [#allocation4], 512
    $region61: #{_variation_pallas.1} parent=1 // pred_fallthru
      _
    %471 = vsyncpa [#allocation3], 1
    %472 = vsyncpa [#allocation6], 1
    %473 = vsyncpa [#allocation9], 1
    %474 = vsyncpa [#allocation4], 1

// kernel: _variation_pallas.1
$region0: #{_variation_pallas.1}
  #allocation0 [shape = 'u32[]', space=smem, size = 0x4, offset = 0x4, fixed_abs, tag = 'smem constant byte address 0x4 - core index']
  #allocation1 [shape = 'u32[72,128]{1,0:T(1,128)}', space=vmem, size = 0x9000, scoped, tag = 'internal scratch']
  %s0 = inlined_call_operand.hbm [shape: f32[16,32], index: 0, kind: input, shape index: {}]
  %s1 = inlined_call_operand.hbm [shape: f32[16,64], index: 1, kind: input, shape index: {}]
  %s2 = inlined_call_operand.vmem [shape: f32[32,64], index: 2, kind: input, shape index: {}]
  %s3 = inlined_call_operand.vmem [shape: f32[64,64], index: 3, kind: input, shape index: {}]
  %s4 = inlined_call_operand.hbm [shape: f32[64,128], index: 4, kind: input, shape index: {}]
  %s5 = inlined_call_operand.vmem [shape: f32[64,32], index: 5, kind: input, shape index: {}]
  %s6 = inlined_call_operand.hbm [shape: f32[32,32], index: 6, kind: input, shape index: {}]
  %s7 = inlined_call_operand.hbm [shape: f32[8,128], index: 7, kind: input, shape index: {}]
  %s8 = inlined_call_operand.hbm [shape: f32[16,256], index: 8, kind: output, shape index: {}]
  %s9 = sld [smem:[#allocation0]]
  $region62: #{_variation_pallas.1} parent=0
    _
  %s11 = ssub.s32 1, %s9
  %s12 = scalar_select 0, %s11, %s9
  $region1: #{_variation_pallas.1} parent=0
    #allocation2 [shape = 'u8[8192]{0}', space=vmem, size = 0x2000, scoped, tag = 'input window, operand 0, single buffered']
    #allocation3 [shape = 's32[1]{0}', space=sflag, size = 0x4, scoped, tag = 'scoped memory for _variation_pallas.1']
    #allocation4 [shape = 's32[1]{0}', space=sflag, size = 0x4, scoped, tag = 'scoped memory for _variation_pallas.1']
    #allocation5 [shape = 'u8[8192]{0}', space=vmem, size = 0x2000, scoped, tag = 'input window, operand 1, single buffered']
    #allocation6 [shape = 's32[1]{0}', space=sflag, size = 0x4, scoped, tag = 'scoped memory for _variation_pallas.1']
    #allocation7 [shape = 'u8[32768]{0}', space=vmem, size = 0x8000, scoped, tag = 'input window, operand 4, single buffered']
    #allocation8 [shape = 'u8[16384]{0}', space=vmem, size = 0x4000, scoped, tag = 'input window, operand 6, single buffered']
    #allocation9 [shape = 's32[1]{0}', space=sflag, size = 0x4, scoped, tag = 'scoped memory for _variation_pallas.1']
    #allocation10 [shape = 'u8[4096]{0}', space=vmem, size = 0x1000, scoped, tag = 'input window, operand 7, single buffered']
    #allocation11 [shape = 'u8[16384]{0}', space=vmem, size = 0x4000, scoped, tag = 'output window, operand 0, single buffered']
    %13 = vsyncpa [#allocation3], 0
    %14 = vsyncpa [#allocation6], 0
    %15 = vsyncpa [#allocation9], 0
    %16 = vsyncpa [#allocation4], 0
    // Predicated region
    $region2: #{_variation_pallas.1} parent=1 // pred_check
      _
    $region3: #{_variation_pallas.1} parent=1 // pred_check_branch
      %18 = sbr.rel (0) target = $region5
    $region4: #{_variation_pallas.1} parent=1 // pred_region
      %20 = vsyncadd [#allocation3], 0
      %s21 = sshll.u32 %s0, 4
      %s22 = int_to_ptr.hbm [resolvable:$true] %s21
      %s23 = sshll.u32 [#allocation2], 4
      %s24 = int_to_ptr.vmem [resolvable:$true] %s23
      %29 = dma.hbm_to_vmem [thread:$0]  %s22, 256, %s24, [#allocation3], 128, 128, 8
    $region5: #{_variation_pallas.1} parent=1 // pred_fallthru
      _
    // Predicated region
    $region6: #{_variation_pallas.1} parent=1 // pred_check
      _
    $region7: #{_variation_pallas.1} parent=1 // pred_check_branch
      %31 = sbr.rel (0) target = $region9
    $region8: #{_variation_pallas.1} parent=1 // pred_region
      %33 = vsyncadd [#allocation6], 0
      %s34 = sshll.u32 %s1, 4
      %s35 = int_to_ptr.hbm [resolvable:$true] %s34
      %s36 = sshll.u32 [#allocation5], 4
      %s37 = int_to_ptr.vmem [resolvable:$true] %s36
      %42 = dma.hbm_to_vmem [thread:$0]  %s35, 256, %s37, [#allocation6], 128, 128, 8
    $region9: #{_variation_pallas.1} parent=1 // pred_fallthru
      _
    // Predicated region
    $region10: #{_variation_pallas.1} parent=1 // pred_check
      _
    $region11: #{_variation_pallas.1} parent=1 // pred_check_branch
      %44 = sbr.rel (0) target = $region13
    $region12: #{_variation_pallas.1} parent=1 // pred_region
      _
    $region13: #{_variation_pallas.1} parent=1 // pred_fallthru
      _
    // Predicated region
    $region14: #{_variation_pallas.1} parent=1 // pred_check
      _
    $region15: #{_variation_pallas.1} parent=1 // pred_check_branch
      %46 = sbr.rel (0) target = $region17
    $region16: #{_variation_pallas.1} parent=1 // pred_region
      _
    $region17: #{_variation_pallas.1} parent=1 // pred_fallthru
      _
    // Predicated region
    $region18: #{_variation_pallas.1} parent=1 // pred_check
      _
    $region19: #{_variation_pallas.1} parent=1 // pred_check_branch
      %48 = sbr.rel (0) target = $region21
    $region20: #{_variation_pallas.1} parent=1 // pred_region
      %50 = vsyncadd [#allocation6], 0
      %s51 = sshll.u32 %s4, 4
      %s52 = int_to_ptr.hbm [resolvable:$true] %s51
      %s53 = sshll.u32 [#allocation7], 4
      %s54 = int_to_ptr.vmem [resolvable:$true] %s53
      %59 = dma.hbm_to_vmem [thread:$0]  %s52, 1024, %s54, [#allocation6], 128, 128, 8
    $region21: #{_variation_pallas.1} parent=1 // pred_fallthru
      _
    // Predicated region
    $region22: #{_variation_pallas.1} parent=1 // pred_check
      _
    $region23: #{_variation_pallas.1} parent=1 // pred_check_branch
      %61 = sbr.rel (0) target = $region25
    $region24: #{_variation_pallas.1} parent=1 // pred_region
      _
    $region25: #{_variation_pallas.1} parent=1 // pred_fallthru
      _
    // Predicated region
    $region26: #{_variation_pallas.1} parent=1 // pred_check
      _
    $region27: #{_variation_pallas.1} parent=1 // pred_check_branch
      %63 = sbr.rel (0) target = $region29
    $region28: #{_variation_pallas.1} parent=1 // pred_region
      %65 = vsyncadd [#allocation9], 0
      %s66 = sshll.u32 %s6, 4
      %s67 = int_to_ptr.hbm [resolvable:$true] %s66
      %s68 = sshll.u32 [#allocation8], 4
      %s69 = int_to_ptr.vmem [resolvable:$true] %s68
      %74 = dma.hbm_to_vmem [thread:$0]  %s67, 512, %s69, [#allocation9], 128, 128, 8
    $region29: #{_variation_pallas.1} parent=1 // pred_fallthru
      _
    // Predicated region
    $region30: #{_variation_pallas.1} parent=1 // pred_check
      _
    $region31: #{_variation_pallas.1} parent=1 // pred_check_branch
      %76 = sbr.rel (0) target = $region33
    $region32: #{_variation_pallas.1} parent=1 // pred_region
      %78 = vsyncadd [#allocation9], 0
      %s80 = sshll.u32 %s7, 4
      %s81 = int_to_ptr.hbm [resolvable:$true] %s80
      %s82 = sshll.u32 [#allocation10], 4
      %s83 = int_to_ptr.vmem [resolvable:$true] %s82
      %85 = dma.hbm_to_vmem [thread:$0]  %s81, 128, %s83, [#allocation9]
    $region33: #{_variation_pallas.1} parent=1 // pred_fallthru
      _
    // Predicated region
    $region34: #{_variation_pallas.1} parent=1 // pred_check
      _
    $region35: #{_variation_pallas.1} parent=1 // pred_check_branch
      %87 = sbr.rel (0) target = $region37
    $region36: #{_variation_pallas.1} parent=1 // pred_region
      %89 = dma.done [#allocation3], 256
    $region37: #{_variation_pallas.1} parent=1 // pred_fallthru
      _
    // Predicated region
    $region38: #{_variation_pallas.1} parent=1 // pred_check
      _
    $region39: #{_variation_pallas.1} parent=1 // pred_check_branch
      %91 = sbr.rel (0) target = $region41
    $region40: #{_variation_pallas.1} parent=1 // pred_region
      %93 = dma.done [#allocation6], 256
    $region41: #{_variation_pallas.1} parent=1 // pred_fallthru
      _
    // Predicated region
    $region42: #{_variation_pallas.1} parent=1 // pred_check
      _
    $region43: #{_variation_pallas.1} parent=1 // pred_check_branch
      %95 = sbr.rel (0) target = $region45
    $region44: #{_variation_pallas.1} parent=1 // pred_region
      %97 = dma.done [#allocation6], 1024
    $region45: #{_variation_pallas.1} parent=1 // pred_fallthru
      _
    // Predicated region
    $region46: #{_variation_pallas.1} parent=1 // pred_check
      _
    $region47: #{_variation_pallas.1} parent=1 // pred_check_branch
      %99 = sbr.rel (0) target = $region49
    $region48: #{_variation_pallas.1} parent=1 // pred_region
      %101 = dma.done [#allocation9], 512
    $region49: #{_variation_pallas.1} parent=1 // pred_fallthru
      _
    // Predicated region
    $region50: #{_variation_pallas.1} parent=1 // pred_check
      _
    $region51: #{_variation_pallas.1} parent=1 // pred_check_branch
      %103 = sbr.rel (0) target = $region53
    $region52: #{_variation_pallas.1} parent=1 // pred_region
      %105 = dma.done [#allocation9], 128
    $region53: #{_variation_pallas.1} parent=1 // pred_fallthru
      _
    %v106 = vld [vmem:[#allocation10] sm:$0xff]
    %v107 = vld [vmem:[#allocation2] sm:$0xff]
    %v108 = vld [vmem:[#allocation2 + $0x8] sm:$0xff]
    %v109 = vtanh.pop %v107
    %v110 = vtanh.pop %v108
    %v111 = vld [vmem:[#allocation8] sm:$0xff]
    %v112 = vld [vmem:[#allocation8 + $0x8] sm:$0xff]
    %v113 = vld [vmem:[#allocation8 + $0x10] sm:$0xff]
    %v114 = vld [vmem:[#allocation8 + $0x18] sm:$0xff]
    %vm115 = vcmask 261120
    %v117 = vsel %vm115, %v109, 0
    %v120 = vsel %vm115, %v110, 0
    %122 = vmatpush.msra.mxu0 0.0
    %123 = vmatpush.msra.mxu0 0.0
    %124 = vmatpush.msra.mxu0 0.0
    %125 = vmatpush.msra.mxu0 0.0
    %126 = vmatpush.msra.mxu0 0.0
    %127 = vmatpush.msra.mxu0 0.0
    %128 = vmatpush.msra.mxu0 0.0
    %129 = vmatpush.msra.mxu0 0.0
    %130 = vmatpush.msra.mxu0 0.0
    %131 = vmatpush.msra.mxu0 0.0
    %132 = vmatpush.msra.mxu0 0.0
    %133 = vmatpush.msra.mxu0 0.0
    %134 = vmatpush.msra.mxu0 %v114
    %135 = vmatpush.msra.mxu0 %v113
    %136 = vmatpush.msra.mxu0 %v112
    %137 = vmatpush.msra.mxu0 %v111
    %138 = vmatmul.f32.gmra.mxu0 %v117
    %v139 = vpop.f32.mrf.mxu0
    %v140 = vadd.f32 0.0, %v139
    %141 = vmatmul.f32.gmra.mxu0 %v120
    %v142 = vpop.f32.mrf.mxu0
    %v143 = vadd.f32 0.0, %v142
    %144 = vdwg.mxu0
    %v145 = vld [vmem:[%s2] sm:$0xff]
    %v146 = vld [vmem:[%s2 + $0x8] sm:$0xff]
    %v147 = vld [vmem:[%s2 + $0x10] sm:$0xff]
    %v148 = vld [vmem:[%s2 + $0x18] sm:$0xff]
    %v149 = vperm.slane %v106, 0
    %v151 = vsel %vm115, %v107, 0
    %v154 = vsel %vm115, %v108, 0
    %156 = vmatpush.msra.mxu0 0.0
    %157 = vmatpush.msra.mxu0 0.0
    %158 = vmatpush.msra.mxu0 0.0
    %159 = vmatpush.msra.mxu0 0.0
    %160 = vmatpush.msra.mxu0 0.0
    %161 = vmatpush.msra.mxu0 0.0
    %162 = vmatpush.msra.mxu0 0.0
    %163 = vmatpush.msra.mxu0 0.0
    %164 = vmatpush.msra.mxu0 0.0
    %165 = vmatpush.msra.mxu0 0.0
    %166 = vmatpush.msra.mxu0 0.0
    %167 = vmatpush.msra.mxu0 0.0
    %168 = vmatpush.msra.mxu0 %v148
    %169 = vmatpush.msra.mxu0 %v147
    %170 = vmatpush.msra.mxu0 %v146
    %171 = vmatpush.msra.mxu0 %v145
    %172 = vmatmul.f32.gmra.mxu0 %v151
    %v173 = vpop.f32.mrf.mxu0
    %v174 = vadd.f32 %v149, %v173
    %175 = vmatmul.f32.gmra.mxu0 %v154
    %v176 = vpop.f32.mrf.mxu0
    %v177 = vadd.f32 %v149, %v176
    %178 = vdwg.mxu0
    %vm179 = vcmask 523264
    %v180 = vsel %vm179, %v174, 0.0
    %181 = vadd.xlane.f32.xlu0 %v180
    %v182 = vpop.xlane.xlu0 %181
    %v183 = vsel %vm179, %v177, 0.0
    %184 = vadd.xlane.f32.xlu0 %v183
    %v185 = vpop.xlane.xlu0 %184
    %v186 = vrcp.pop 64.0
    %v187 = vmul.f32 64.0, %v186
    %v188 = vsub.f32 1.0, %v187
    %v189 = vmul.f32 %v186, %v188
    %v190 = vadd.f32 %v186, %v189
    %vm191 = vweird.f32 %v186
    %v192 = vsel %vm191, %v186, %v190
    %v193 = vmul.f32 %v182, %v192
    %v194 = vmul.f32 %v185, %v192
    %v195 = vsub.f32 %v174, %v193
    %v196 = vsub.f32 %v177, %v194
    %v197 = vmul.f32 %v195, %v195
    %v198 = vmul.f32 %v196, %v196
    %v199 = vsel %vm179, %v197, 0.0
    %200 = vadd.xlane.f32.xlu0 %v199
    %v201 = vpop.xlane.xlu0 %200
    %v202 = vsel %vm179, %v198, 0.0
    %203 = vadd.xlane.f32.xlu0 %v202
    %v204 = vpop.xlane.xlu0 %203
    %v205 = vmul.f32 %v201, %v192
    %v206 = vmul.f32 %v204, %v192
    %v207 = vadd.f32 %v205, 1e-05
    %v208 = vadd.f32 %v206, 1e-05
    %v209 = vrsqrt.pop %v207
    %v210 = vmul.f32 %v209, %v207
    %v211 = vmul.f32 %v210, %v209
    %v212 = vmul.f32 0.5, %v211
    %v213 = vsub.f32 1.5, %v212
    %v214 = vmul.f32 %v209, %v213
    %vm215 = vweird.f32 %v207
    %vm216 = vweird.f32 %v209
    %vm217 = vmor %vm215, %vm216
    %v218 = vsel %vm217, %v209, %v214
    %v219 = vrsqrt.pop %v208
    %v220 = vmul.f32 %v219, %v208
    %v221 = vmul.f32 %v220, %v219
    %v222 = vmul.f32 0.5, %v221
    %v223 = vsub.f32 1.5, %v222
    %v224 = vmul.f32 %v219, %v223
    %vm225 = vweird.f32 %v208
    %vm226 = vweird.f32 %v219
    %vm227 = vmor %vm225, %vm226
    %v228 = vsel %vm227, %v219, %v224
    %v229 = vmul.f32 %v195, %v218
    %v230 = vmul.f32 %v196, %v228
    %v231 = vperm.slane %v106, 1
    %v232 = vmul.f32 %v229, %v231
    %v233 = vmul.f32 %v230, %v231
    %v234 = vperm.slane %v106, 2
    %v235 = vadd.f32 %v232, %v234
    %v236 = vadd.f32 %v233, %v234
    %v237 = vtanh.pop %v235
    %v238 = vtanh.pop %v236
    %v239 = vld [vmem:[%s3] sm:$0xff]
    %v240 = vld [vmem:[%s3 + $0x8] sm:$0xff]
    %v241 = vld [vmem:[%s3 + $0x10] sm:$0xff]
    %v242 = vld [vmem:[%s3 + $0x18] sm:$0xff]
    %v243 = vld [vmem:[%s3 + $0x20] sm:$0xff]
    %v244 = vld [vmem:[%s3 + $0x28] sm:$0xff]
    %v245 = vld [vmem:[%s3 + $0x30] sm:$0xff]
    %v246 = vld [vmem:[%s3 + $0x38] sm:$0xff]
    %v247 = vperm.slane %v106, 3
    %v249 = vsel %vm179, %v237, 0
    %v252 = vsel %vm179, %v238, 0
    %254 = vmatpush.msra.mxu0 0.0
    %255 = vmatpush.msra.mxu0 0.0
    %256 = vmatpush.msra.mxu0 0.0
    %257 = vmatpush.msra.mxu0 0.0
    %258 = vmatpush.msra.mxu0 0.0
    %259 = vmatpush.msra.mxu0 0.0
    %260 = vmatpush.msra.mxu0 0.0
    %261 = vmatpush.msra.mxu0 0.0
    %262 = vmatpush.msra.mxu0 %v246
    %263 = vmatpush.msra.mxu0 %v245
    %264 = vmatpush.msra.mxu0 %v244
    %265 = vmatpush.msra.mxu0 %v243
    %266 = vmatpush.msra.mxu0 %v242
    %267 = vmatpush.msra.mxu0 %v241
    %268 = vmatpush.msra.mxu0 %v240
    %269 = vmatpush.msra.mxu0 %v239
    %270 = vmatmul.f32.gmra.mxu0 %v249
    %v271 = vpop.f32.mrf.mxu0
    %v272 = vadd.f32 %v247, %v271
    %273 = vmatmul.f32.gmra.mxu0 %v252
    %v274 = vpop.f32.mrf.mxu0
    %v275 = vadd.f32 %v247, %v274
    %276 = vdwg.mxu0
    %v277 = vsel %vm179, %v272, 0.0
    %278 = vadd.xlane.f32.xlu0 %v277
    %v279 = vpop.xlane.xlu0 %278
    %v280 = vsel %vm179, %v275, 0.0
    %281 = vadd.xlane.f32.xlu0 %v280
    %v282 = vpop.xlane.xlu0 %281
    %v283 = vmul.f32 %v279, %v192
    %v284 = vmul.f32 %v282, %v192
    %v285 = vsub.f32 %v272, %v283
    %v286 = vsub.f32 %v275, %v284
    %v287 = vmul.f32 %v285, %v285
    %v288 = vmul.f32 %v286, %v286
    %v289 = vsel %vm179, %v287, 0.0
    %290 = vadd.xlane.f32.xlu0 %v289
    %v291 = vpop.xlane.xlu0 %290
    %v292 = vsel %vm179, %v288, 0.0
    %293 = vadd.xlane.f32.xlu0 %v292
    %v294 = vpop.xlane.xlu0 %293
    %v295 = vmul.f32 %v291, %v192
    %v296 = vmul.f32 %v294, %v192
    %v297 = vadd.f32 %v295, 1e-05
    %v298 = vadd.f32 %v296, 1e-05
    %v299 = vrsqrt.pop %v297
    %v300 = vmul.f32 %v299, %v297
    %v301 = vmul.f32 %v300, %v299
    %v302 = vmul.f32 0.5, %v301
    %v303 = vsub.f32 1.5, %v302
    %v304 = vmul.f32 %v299, %v303
    %vm305 = vweird.f32 %v297
    %vm306 = vweird.f32 %v299
    %vm307 = vmor %vm305, %vm306
    %v308 = vsel %vm307, %v299, %v304
    %v309 = vrsqrt.pop %v298
    %v310 = vmul.f32 %v309, %v298
    %v311 = vmul.f32 %v310, %v309
    %v312 = vmul.f32 0.5, %v311
    %v313 = vsub.f32 1.5, %v312
    %v314 = vmul.f32 %v309, %v313
    %vm315 = vweird.f32 %v298
    %vm316 = vweird.f32 %v309
    %vm317 = vmor %vm315, %vm316
    %v318 = vsel %vm317, %v309, %v314
    %v319 = vmul.f32 %v285, %v308
    %v320 = vmul.f32 %v286, %v318
    %v321 = vperm.slane %v106, 4
    %v322 = vmul.f32 %v319, %v321
    %v323 = vmul.f32 %v320, %v321
    %v324 = vperm.slane %v106, 5
    %v325 = vadd.f32 %v322, %v324
    %v326 = vadd.f32 %v323, %v324
    %v327 = vtanh.pop %v325
    %v328 = vtanh.pop %v326
    %v329 = vld [vmem:[#allocation7] sm:$0xff]
    %v330 = vld [vmem:[#allocation7 + $0x8] sm:$0xff]
    %v331 = vld [vmem:[#allocation7 + $0x10] sm:$0xff]
    %v332 = vld [vmem:[#allocation7 + $0x18] sm:$0xff]
    %v333 = vld [vmem:[#allocation7 + $0x20] sm:$0xff]
    %v334 = vld [vmem:[#allocation7 + $0x28] sm:$0xff]
    %v335 = vld [vmem:[#allocation7 + $0x30] sm:$0xff]
    %v336 = vld [vmem:[#allocation7 + $0x38] sm:$0xff]
    %v337 = vperm.slane %v106, 6
    %v339 = vsel %vm179, %v327, 0
    %v342 = vsel %vm179, %v328, 0
    %344 = vmatpush.msra.mxu0 0.0
    %345 = vmatpush.msra.mxu0 0.0
    %346 = vmatpush.msra.mxu0 0.0
    %347 = vmatpush.msra.mxu0 0.0
    %348 = vmatpush.msra.mxu0 0.0
    %349 = vmatpush.msra.mxu0 0.0
    %350 = vmatpush.msra.mxu0 0.0
    %351 = vmatpush.msra.mxu0 0.0
    %352 = vmatpush.msra.mxu0 %v336
    %353 = vmatpush.msra.mxu0 %v335
    %354 = vmatpush.msra.mxu0 %v334
    %355 = vmatpush.msra.mxu0 %v333
    %356 = vmatpush.msra.mxu0 %v332
    %357 = vmatpush.msra.mxu0 %v331
    %358 = vmatpush.msra.mxu0 %v330
    %359 = vmatpush.msra.mxu0 %v329
    %360 = vmatmul.f32.gmra.mxu0 %v339
    %v361 = vpop.f32.mrf.mxu0
    %v362 = vadd.f32 %v337, %v361
    %363 = vmatmul.f32.gmra.mxu0 %v342
    %v364 = vpop.f32.mrf.mxu0
    %v365 = vadd.f32 %v337, %v364
    %366 = vdwg.mxu0
    %v367 = vmul.f32 %v362, 0.5
    %v368 = vmul.f32 %v365, 0.5
    %v369 = vmul.f32 %v367, 1.442695
    %v370 = vpow.pop %v369
    %v371 = vmul.f32 %v368, 1.442695
    %v372 = vpow.pop %v371
    %v373 = vld [vmem:[#allocation5] sm:$0xff]
    %v374 = vld [vmem:[#allocation5 + $0x8] sm:$0xff]
    %377 = vrot.lane.b32.xlu0 %v370, 64
    %v378 = vpop.permute.xlu0 %377
    %379 = vrot.lane.b32.xlu0 %v372, 64
    %v380 = vpop.permute.xlu0 %379
    %v383 = vmul.f32 %v373, %v378
    %v384 = vmul.f32 %v374, %v380
    %v385 = vadd.f32 %v383, %v362
    %v386 = vadd.f32 %v384, %v365
    %v387 = vtanh.pop %v385
    %v388 = vtanh.pop %v386
    %v389 = vld [vmem:[%s5] sm:$0xff]
    %v390 = vld [vmem:[%s5 + $0x8] sm:$0xff]
    %v391 = vld [vmem:[%s5 + $0x10] sm:$0xff]
    %v392 = vld [vmem:[%s5 + $0x18] sm:$0xff]
    %v393 = vld [vmem:[%s5 + $0x20] sm:$0xff]
    %v394 = vld [vmem:[%s5 + $0x28] sm:$0xff]
    %v395 = vld [vmem:[%s5 + $0x30] sm:$0xff]
    %v396 = vld [vmem:[%s5 + $0x38] sm:$0xff]
    %v398 = vsel %vm179, %v387, 0
    %v401 = vsel %vm179, %v388, 0
    %403 = vmatpush.msra.mxu0 0.0
    %404 = vmatpush.msra.mxu0 0.0
    %405 = vmatpush.msra.mxu0 0.0
    %406 = vmatpush.msra.mxu0 0.0
    %407 = vmatpush.msra.mxu0 0.0
    %408 = vmatpush.msra.mxu0 0.0
    %409 = vmatpush.msra.mxu0 0.0
    %410 = vmatpush.msra.mxu0 0.0
    %411 = vmatpush.msra.mxu0 %v396
    %412 = vmatpush.msra.mxu0 %v395
    %413 = vmatpush.msra.mxu0 %v394
    %414 = vmatpush.msra.mxu0 %v393
    %415 = vmatpush.msra.mxu0 %v392
    %416 = vmatpush.msra.mxu0 %v391
    %417 = vmatpush.msra.mxu0 %v390
    %418 = vmatpush.msra.mxu0 %v389
    %419 = vmatmul.f32.gmra.mxu0 %v398
    %v420 = vpop.f32.mrf.mxu0
    %v421 = vadd.f32 %v140, %v420
    %422 = vmatmul.f32.gmra.mxu0 %v401
    %v423 = vpop.f32.mrf.mxu0
    %v424 = vadd.f32 %v143, %v423
    %425 = vdwg.mxu0
    %v426 = vperm.slane %v106, 7
    %v427 = vadd.f32 %v421, %v426
    %v428 = vadd.f32 %v424, %v426
    %431 = vrot.lane.b32.xlu0 %v362, 32
    %v432 = vpop.permute.xlu0 %431
    %433 = vrot.lane.b32.xlu0 %v365, 32
    %v434 = vpop.permute.xlu0 %433
    %437 = vrot.lane.b32.xlu0 %v370, 32
    %v438 = vpop.permute.xlu0 %437
    %439 = vrot.lane.b32.xlu0 %v372, 32
    %v440 = vpop.permute.xlu0 %439
    %v443 = vsel %vm115, %v427, %v432
    %v444 = vsel %vm115, %v428, %v434
    %vm445 = vcmask 785408
    %v446 = vsel %vm445, %v443, %v438
    %v447 = vsel %vm445, %v444, %v440
    %v448 = vsel %vm115, %v438, 0.0
    %v449 = vsel %vm115, %v440, 0.0
    %450 = vst [vmem:[#allocation11] sm:$0xff] %v446
    %451 = vst [vmem:[#allocation11 + $0x8] sm:$0xff] %v448
    %452 = vst [vmem:[#allocation11 + $0x10] sm:$0xff] %v447
    %453 = vst [vmem:[#allocation11 + $0x18] sm:$0xff] %v449
    // Predicated region
    $region54: #{_variation_pallas.1} parent=1 // pred_check
      _
    $region55: #{_variation_pallas.1} parent=1 // pred_check_branch
      %455 = sbr.rel (0) target = $region57
    $region56: #{_variation_pallas.1} parent=1 // pred_region
      %457 = vsyncadd [#allocation4], 0
      %s458 = sshll.u32 [#allocation11], 4
      %s459 = int_to_ptr.vmem [resolvable:$true] %s458
      %s460 = sshll.u32 %s8, 4
      %s461 = int_to_ptr.hbm [resolvable:$true] %s460
      %466 = dma.vmem_to_hbm [thread:$0]  %s459, 512, %s461, [#allocation4], 256, 256, 16
    $region57: #{_variation_pallas.1} parent=1 // pred_fallthru
      _
    // Predicated region
    $region58: #{_variation_pallas.1} parent=1 // pred_check
      _
    $region59: #{_variation_pallas.1} parent=1 // pred_check_branch
      %468 = sbr.rel (0) target = $region61
    $region60: #{_variation_pallas.1} parent=1 // pred_region
      %470 = dma.done [#allocation4], 512
    $region61: #{_variation_pallas.1} parent=1 // pred_fallthru
      _
    %471 = vsyncpa [#allocation3], 1
    %472 = vsyncpa [#allocation6], 1
    %473 = vsyncpa [#allocation9], 1
    %474 = vsyncpa [#allocation4], 1

</llo_original>
